<compile_context>
chip_gen: v7x
topology: tpu7x:2x2x1
jax: 0.10.0
libtpu: 0.0.40
codegen_flags: <defaults>
</compile_context>

<pallas_src>
import functools

import jax
import jax.numpy as jnp
from jax.experimental import pallas as pl
from jax.experimental.pallas import tpu as pltpu


def _round_up(x, m):
    return (x + m - 1) // m * m


def _choose_group(B, NCp):
    """Batch rows (of X / d / zl) per grid step.  tile = G*NCp is the MXU M dim.
    G stays a multiple of 8 (sublane alignment of the (G, Hp) coefficient blocks);
    grow toward ~256-row tiles while keeping >= 4 grid steps when B allows (so both
    v7x TensorCores get >= 2 pipelined steps), else settle for >= 2 steps."""
    G = 8
    while 2 * G * NCp <= 256 and -(-B // (2 * G)) >= 4:
        G *= 2
    while G * NCp < 128 and -(-B // (2 * G)) >= 2:
        G *= 2
    return G


def _dual_objective_kernel(eps_ref, c_ref, d_ref, z_ref, wb_ref,
                           w1_ref, w2n_ref, b2_ref, out_ref):
    """One tile of G batch rows x NCp constraints (T = G*NCp MXU rows)."""
    eps = eps_ref[0]                              # SMEM scalar
    G, NCp = out_ref.shape
    T, CO = c_ref.shape
    Hp = d_ref.shape[1]

    c = c_ref[...]                                # (T, CO)
    # nu1 = (-c) @ W2 : negation folded into the resident -W2 (f32; K = CO is tiny).
    nu1 = jnp.dot(c, w2n_ref[...], preferred_element_type=jnp.float32)    # (T, Hp)

    d = d_ref[...]                                # (G, Hp)  DualReLU slope
    z = z_ref[...]                                # (G, Hp)  zl * I
    wb = wb_ref[...]                              # (G, Hp)  W1 @ x + b1 per batch row

    # DualReLU.T : nu2 = d * nu1, d broadcast over the NCp constraints of each
    # batch row (sublane-axis split; layout-free because NCp % 8 == 0).
    nu2_3 = nu1.reshape(G, NCp, Hp) * d[:, None, :]                       # (G, NCp, Hp)

    # Fused H-axis objective:
    #   sum_h( zl*I*[nu2]_+  -  nu2*(W1 x + b1) )
    # = DualReLU.objective + DualLinear1.objective + the -nu3.x part of InfBall.
    obj_h = jnp.sum(jnp.maximum(nu2_3, 0.0) * z[:, None, :]
                    - nu2_3 * wb[:, None, :], axis=-1)                    # (G, NCp)

    # DualLinear1.T : nu3 = nu2 @ W1 -- only needed for eps * ||nu3||_1.
    nu2 = nu2_3.reshape(T, Hp).astype(jnp.bfloat16)                       # bf16 MXU operand
    nu3 = jnp.dot(nu2, w1_ref[...], preferred_element_type=jnp.float32)   # (T, DINp)
    obj_l1 = -eps * jnp.sum(jnp.abs(nu3).reshape(G, NCp, -1), axis=-1)    # (G, NCp)

    # DualLinear2.objective : -nu0.b2 = +c.b2
    obj_b2 = jnp.sum(c.reshape(G, NCp, CO) * b2_ref[...], axis=-1)        # (G, NCp)

    out_ref[...] = obj_h + obj_l1 + obj_b2


def _vmem_limit(T, G, CO, NCp, Hp, DINp):
    streams = 2 * 4 * (T * CO + 3 * G * Hp + G * NCp)        # double-buffered blocks
    resident = 2 * Hp * DINp + 4 * CO * Hp + 4 * CO          # bf16 W1 + f32 -W2, b2
    interm = 4 * T * Hp + 2 * T * Hp + 4 * T * DINp + 4 * T * Hp
    est = streams + resident + interm
    try:
        cap = int(pltpu.get_tpu_info().vmem_capacity_bytes)
    except Exception:
        cap = 64 * 1024 * 1024
    # Never request more than ~85% of physical VMEM (headroom for compiler
    # scratch on v7x's 64 MiB; v5e/v6e may go well above the old 64 MiB clamp).
    return int(min(max(2 * est, 32 * 1024 * 1024), int(0.85 * cap)))


@functools.lru_cache(maxsize=None)
def _build_dual_call(grid, G, NCp, CO, Hp, DINp, vmem_limit):
    T = G * NCp
    Bp = grid * G
    # TODO(synk): on v5e, pipeline_mode=pl.Buffered(3) on the streamed specs can help
    # if the (now small) c/d/z/wb DMAs are still exposed.
    return pl.pallas_call(
        _dual_objective_kernel,
        out_shape=jax.ShapeDtypeStruct((Bp, NCp), jnp.float32),
        grid=(grid,),
        in_specs=[
            pl.BlockSpec(memory_space=pltpu.MemorySpace.SMEM),    # eps scalar
            pl.BlockSpec((T, CO), lambda i: (i, 0)),              # c rows (T = G*NCp)
            pl.BlockSpec((G, Hp), lambda i: (i, 0)),              # d
            pl.BlockSpec((G, Hp), lambda i: (i, 0)),              # zl * I
            pl.BlockSpec((G, Hp), lambda i: (i, 0)),              # W1 x + b1
            pl.BlockSpec(memory_space=pltpu.MemorySpace.VMEM),    # W1 (bf16, resident)
            pl.BlockSpec(memory_space=pltpu.MemorySpace.VMEM),    # -W2 (resident)
            pl.BlockSpec(memory_space=pltpu.MemorySpace.VMEM),    # b2
        ],
        out_specs=pl.BlockSpec((G, NCp), lambda i: (i, 0)),
        compiler_params=pltpu.CompilerParams(
            dimension_semantics=("parallel",),
            vmem_limit_bytes=vmem_limit),
    )


class DualNetworkPallas:
    """JAX/Pallas port of convex_adversarial.DualNetwork for a
    Linear(D_in,H) -> ReLU -> Linear(H,C_out) network
    (l1_proj=None, l1_type='exact', bounded_input=False)."""

    def __init__(self, params, X, epsilon):
        W1, b1, W2, b2 = params
        self.eps = float(epsilon)
        H, DIN = W1.shape
        CO = W2.shape[0]
        B = X.shape[0]
        self.H, self.DIN, self.CO, self.B = H, DIN, CO, B

        # ---- __init__-time dual-network construction (plain-JAX setup glue) ----
        # InfBall.bounds() propagated through DualLinear1 (weight + bias):
        wx = X.astype(jnp.float32) @ W1.astype(jnp.float32).T        # (B, H)
        l1 = jnp.sum(jnp.abs(W1), axis=1)                            # (H,)
        zl = wx + b1[None, :] - self.eps * l1[None, :]
        zu = wx + b1[None, :] + self.eps * l1[None, :]
        I = (zu > 0) & (zl < 0)                                      # ambiguous units
        denom = jnp.where(I, zu - zl, 1.0)
        d = (zl >= 0).astype(jnp.float32) + jnp.where(I, zu / denom, 0.0)

        self.zl, self.d, self.imask = zl, d, I.astype(jnp.float32)

        # ---- lane-padded (128-multiple) kernel operands ----
        Hp, DINp = _round_up(H, 128), _round_up(DIN, 128)
        self.Hp, self.DINp = Hp, DINp
        ph, pdin = Hp - H, DINp - DIN

        # Resident weights: W1 in bf16 (big MXU matmul, halved VMEM/DMA);
        # W2 pre-negated so nu0 = -c never materializes (kept f32, K = CO tiny).
        self.W1p = jnp.pad(W1.astype(jnp.float32),
                           ((0, ph), (0, pdin))).astype(jnp.bfloat16)    # (Hp, DINp)
        self.W2n = jnp.pad(-W2.astype(jnp.float32), ((0, 0), (0, ph)))   # (CO, Hp)
        self.b2p = b2.astype(jnp.float32)[None, :]                       # (1, CO)

        # Per-batch-row Hp-wide coefficient streams.  NO DIN-wide X stream: the
        # InfBall -nu3.x term + DualLinear1 -nu2.b1 term fold into -nu2.(W1 x + b1).
        self.dp = jnp.pad(d, ((0, 0), (0, ph)))                          # (B, Hp)
        self.zmp = jnp.pad(zl * self.imask, ((0, 0), (0, ph)))           # (B, Hp)
        self.wbp = jnp.pad(wx + b1[None, :], ((0, 0), (0, ph)))          # (B, Hp)

        self._batch_cache = {}

    def _batch_padded(self, Bp):
        arrs = self._batch_cache.get(Bp)
        if arrs is None:
            if Bp == self.B:
                arrs = (self.dp, self.zmp, self.wbp)
            else:
                pad = ((0, Bp - self.B), (0, 0))
                arrs = tuple(jnp.pad(a, pad) for a in (self.dp, self.zmp, self.wbp))
            self._batch_cache[Bp] = arrs
        return arrs

    def __call__(self, c):
        B, NC, CO = c.shape
        assert B == self.B and CO == self.CO
        Hp, DINp = self.Hp, self.DINp

        NCp = _round_up(NC, 8)            # keeps in-kernel (G, NCp, .) reshapes layout-free
        G = _choose_group(B, NCp)
        grid = -(-B // G)
        Bp = grid * G
        T = G * NCp

        # Pad c along NC and B (padded rows contribute exactly 0), flatten rows.
        c32 = c.astype(jnp.float32)
        if NCp != NC:
            c32 = jnp.pad(c32, ((0, 0), (0, NCp - NC), (0, 0)))
        if Bp != B:
            c32 = jnp.pad(c32, ((0, Bp - B), (0, 0), (0, 0)))
        c2 = c32.reshape(Bp * NCp, CO)    # row r = b*NCp + n

        dp, zmp, wbp = self._batch_padded(Bp)
        eps_arr = jnp.array([self.eps], jnp.float32)

        call = _build_dual_call(grid, G, NCp, CO, Hp, DINp,
                                _vmem_limit(T, G, CO, NCp, Hp, DINp))
        out = call(eps_arr, c2, dp, zmp, wbp, self.W1p, self.W2n, self.b2p)
        return out[:B, :NC]


def dual_forward_reference(params, X, eps, d, zl, imask, c):
    """Pure-JAX f32 replica of DualNetwork.forward for verification."""
    W1, b1, W2, b2 = params
    hi = jax.lax.Precision.HIGHEST
    nu0 = -c
    nu1 = jnp.einsum('bnc,ch->bnh', nu0, W2, precision=hi)
    nu2 = nu1 * d[:, None, :]
    nu3 = jnp.einsum('bnh,hd->bnd', nu2, W1, precision=hi)
    return (-jnp.einsum('bnd,bd->bn', nu3, X, precision=hi)
            - eps * jnp.sum(jnp.abs(nu3), axis=-1)
            - jnp.einsum('bnh,h->bn', nu2, b1, precision=hi)
            + jnp.sum(jnp.maximum(nu2, 0.0) * (zl * imask)[:, None, :], axis=-1)
            - jnp.einsum('bnc,c->bn', nu0, b2, precision=hi))


if __name__ == "__main__":
    # Non-128-aligned H / D_in exercise the lane-padding path; B=16, NC=16 give
    # two (G=8 batch rows) x (NCp=16) = 128-row MXU tiles -> a 2-step parallel grid.
    B, DIN, H, CO, NC = 16, 200, 100, 10, 16
    eps = 0.1

    key = jax.random.PRNGKey(0)
    k0, k1, k2, k3, k4, k5 = jax.random.split(key, 6)
    # Deterministic synthetic parameters (PyTorch-ish uniform fan-in init).
    W1 = jax.random.uniform(k0, (H, DIN), jnp.float32, -1.0, 1.0) / jnp.sqrt(DIN)
    b1 = jax.random.uniform(k1, (H,), jnp.float32, -1.0, 1.0) / jnp.sqrt(DIN)
    W2 = jax.random.uniform(k2, (CO, H), jnp.float32, -1.0, 1.0) / jnp.sqrt(H)
    b2 = jax.random.uniform(k3, (CO,), jnp.float32, -1.0, 1.0) / jnp.sqrt(H)
    X = jax.random.uniform(k4, (B, DIN), jnp.float32, 0.0, 1.0)
    c = jax.random.normal(k5, (B, NC, CO), jnp.float32)

    dual = DualNetworkPallas((W1, b1, W2, b2), X, eps)
    out = jax.block_until_ready(dual(c))

    ref = dual_forward_reference((W1, b1, W2, b2), X, eps,
                                 dual.d, dual.zl, dual.imask, c)
    assert out.shape == (B, NC)
    # The kernel runs the nu2 @ W1 matmul with bf16 operands (f32 accumulation);
    # only the eps*||nu3||_1 term sees that rounding, so a 1e-2 tolerance vs the
    # pure-f32 reference leaves ample margin.
    if not jnp.allclose(out, ref, rtol=1e-2, atol=1e-2):
        err = float(jnp.max(jnp.abs(out - ref)))
        raise AssertionError(
            f"Pallas kernel output does not match reference (max |diff| = {err})")
    print("KERNEL_OK")
</pallas_src>

<mosaic_0001>
module attributes {stable_mosaic.version = 11 : i64} {
  func.func @_dual_objective_kernel(%arg0: i32, %arg1: memref<1xf32, #tpu.memory_space<smem>>, %arg2: memref<128x10xf32, #tpu.memory_space<vmem>>, %arg3: memref<8x128xf32, #tpu.memory_space<vmem>>, %arg4: memref<8x128xf32, #tpu.memory_space<vmem>>, %arg5: memref<8x128xf32, #tpu.memory_space<vmem>>, %arg6: memref<128x256xbf16, #tpu.memory_space<vmem>>, %arg7: memref<10x128xf32, #tpu.memory_space<vmem>>, %arg8: memref<1x10xf32, #tpu.memory_space<vmem>>, %arg9: memref<8x16xf32, #tpu.memory_space<vmem>>) attributes {dimension_semantics = [#tpu.dimension_semantics<parallel>], iteration_bounds = array<i64: 2>, scalar_prefetch = 0 : i64, scratch_operands = 0 : i64, tpu.core_type = #tpu.core_type<tc>, window_params = [{transform_indices = @transform_0, window_bounds = array<i64: 1>}, {transform_indices = @transform_1, window_bounds = array<i64: 128, 10>}, {transform_indices = @transform_2, window_bounds = array<i64: 8, 128>}, {transform_indices = @transform_3, window_bounds = array<i64: 8, 128>}, {transform_indices = @transform_4, window_bounds = array<i64: 8, 128>}, {pipeline_mode = #tpu.pipeline_mode<synchronous>, transform_indices = @transform_5, window_bounds = array<i64: 128, 256>}, {pipeline_mode = #tpu.pipeline_mode<synchronous>, transform_indices = @transform_6, window_bounds = array<i64: 10, 128>}, {pipeline_mode = #tpu.pipeline_mode<synchronous>, transform_indices = @transform_7, window_bounds = array<i64: 1, 10>}, {transform_indices = @transform_8, window_bounds = array<i64: 8, 16>}]} {
    %c0 = arith.constant 0 : index
    %0 = memref.load %arg1[%c0] : memref<1xf32, #tpu.memory_space<smem>>
    %c0_0 = arith.constant 0 : index
    %c0_1 = arith.constant 0 : index
    %1 = vector.load %arg2[%c0_0, %c0_1] : memref<128x10xf32, #tpu.memory_space<vmem>>, vector<128x10xf32>
    %c0_2 = arith.constant 0 : index
    %c0_3 = arith.constant 0 : index
    %2 = vector.load %arg7[%c0_2, %c0_3] : memref<10x128xf32, #tpu.memory_space<vmem>>, vector<10x128xf32>
    %cst = arith.constant dense<0.000000e+00> : vector<128x128xf32>
    %3 = tpu.matmul %1, %2, %cst {dimension_numbers = #tpu.dot_dimension_numbers<[1], [0], [0], [1], [0, 0, 1, 1], [], []>} : vector<128x10xf32>, vector<10x128xf32>, vector<128x128xf32> -> vector<128x128xf32>
    %c0_4 = arith.constant 0 : index
    %c0_5 = arith.constant 0 : index
    %4 = vector.load %arg3[%c0_4, %c0_5] : memref<8x128xf32, #tpu.memory_space<vmem>>, vector<8x128xf32>
    %c0_6 = arith.constant 0 : index
    %c0_7 = arith.constant 0 : index
    %5 = vector.load %arg4[%c0_6, %c0_7] : memref<8x128xf32, #tpu.memory_space<vmem>>, vector<8x128xf32>
    %c0_8 = arith.constant 0 : index
    %c0_9 = arith.constant 0 : index
    %6 = vector.load %arg5[%c0_8, %c0_9] : memref<8x128xf32, #tpu.memory_space<vmem>>, vector<8x128xf32>
    %7 = vector.shape_cast %3 : vector<128x128xf32> to vector<8x16x128xf32>
    %8 = vector.shape_cast %4 : vector<8x128xf32> to vector<8x1x128xf32>
    %9 = vector.broadcast %8 : vector<8x1x128xf32> to vector<8x16x128xf32>
    %10 = arith.mulf %7, %9 : vector<8x16x128xf32>
    %cst_10 = arith.constant 0.000000e+00 : f32
    %11 = vector.broadcast %cst_10 : f32 to vector<8x16x128xf32>
    %12 = arith.maximumf %10, %11 : vector<8x16x128xf32>
    %13 = vector.shape_cast %5 : vector<8x128xf32> to vector<8x1x128xf32>
    %14 = vector.broadcast %13 : vector<8x1x128xf32> to vector<8x16x128xf32>
    %15 = arith.mulf %12, %14 : vector<8x16x128xf32>
    %16 = vector.shape_cast %6 : vector<8x128xf32> to vector<8x1x128xf32>
    %17 = vector.broadcast %16 : vector<8x1x128xf32> to vector<8x16x128xf32>
    %18 = arith.mulf %10, %17 : vector<8x16x128xf32>
    %19 = arith.subf %15, %18 : vector<8x16x128xf32>
    %cst_11 = arith.constant dense<0.000000e+00> : vector<8x16xf32>
    %20 = vector.multi_reduction <add>, %19, %cst_11 [2] : vector<8x16x128xf32> to vector<8x16xf32>
    %21 = vector.shape_cast %10 : vector<8x16x128xf32> to vector<128x128xf32>
    %22 = arith.truncf %21 : vector<128x128xf32> to vector<128x128xbf16>
    %c0_12 = arith.constant 0 : index
    %c0_13 = arith.constant 0 : index
    %23 = vector.load %arg6[%c0_12, %c0_13] : memref<128x256xbf16, #tpu.memory_space<vmem>>, vector<128x256xbf16>
    %cst_14 = arith.constant dense<0.000000e+00> : vector<128x256xf32>
    %24 = tpu.matmul %22, %23, %cst_14 {dimension_numbers = #tpu.dot_dimension_numbers<[1], [0], [0], [1], [0, 0, 1, 1], [], []>} : vector<128x128xbf16>, vector<128x256xbf16>, vector<128x256xf32> -> vector<128x256xf32>
    %cst_15 = arith.constant 0.000000e+00 : f32
    %25 = arith.subf %cst_15, %0 : f32
    %26 = math.absf %24 : vector<128x256xf32>
    %27 = vector.shape_cast %26 : vector<128x256xf32> to vector<8x16x256xf32>
    %cst_16 = arith.constant dense<0.000000e+00> : vector<8x16xf32>
    %28 = vector.multi_reduction <add>, %27, %cst_16 [2] : vector<8x16x256xf32> to vector<8x16xf32>
    %29 = vector.broadcast %25 : f32 to vector<8x16xf32>
    %30 = arith.mulf %29, %28 : vector<8x16xf32>
    %31 = vector.shape_cast %1 : vector<128x10xf32> to vector<8x16x10xf32>
    %c0_17 = arith.constant 0 : index
    %c0_18 = arith.constant 0 : index
    %32 = vector.load %arg8[%c0_17, %c0_18] : memref<1x10xf32, #tpu.memory_space<vmem>>, vector<1x10xf32>
    %33 = vector.shape_cast %32 : vector<1x10xf32> to vector<1x1x10xf32>
    %34 = vector.broadcast %33 : vector<1x1x10xf32> to vector<8x16x10xf32>
    %35 = arith.mulf %31, %34 : vector<8x16x10xf32>
    %cst_19 = arith.constant dense<0.000000e+00> : vector<8x16xf32>
    %36 = vector.multi_reduction <add>, %35, %cst_19 [2] : vector<8x16x10xf32> to vector<8x16xf32>
    %37 = arith.addf %20, %30 : vector<8x16xf32>
    %38 = arith.addf %37, %36 : vector<8x16xf32>
    %c0_20 = arith.constant 0 : index
    %c0_21 = arith.constant 0 : index
    %39 = vector.load %arg9[%c0_20, %c0_21] : memref<8x16xf32, #tpu.memory_space<vmem>>, vector<8x16xf32>
    tpu.vector_store %arg9[%c0_20, %c0_21], %38 {strides = array<i32>} : memref<8x16xf32, #tpu.memory_space<vmem>>, vector<8x16xf32>,
    return
  }
  func.func @transform_0(%arg0: i32) -> i32 {
    %c0_i32 = arith.constant 0 : i32
    %c0_i32_0 = arith.constant 0 : i32
    return %c0_i32 : i32
  }
  func.func @transform_1(%arg0: i32) -> (i32, i32) {
    %c0_i32 = arith.constant 0 : i32
    %c0_i32_0 = arith.constant 0 : i32
    return %arg0, %c0_i32 : i32, i32
  }
  func.func @transform_2(%arg0: i32) -> (i32, i32) {
    %c0_i32 = arith.constant 0 : i32
    %c0_i32_0 = arith.constant 0 : i32
    return %arg0, %c0_i32 : i32, i32
  }
  func.func @transform_3(%arg0: i32) -> (i32, i32) {
    %c0_i32 = arith.constant 0 : i32
    %c0_i32_0 = arith.constant 0 : i32
    return %arg0, %c0_i32 : i32, i32
  }
  func.func @transform_4(%arg0: i32) -> (i32, i32) {
    %c0_i32 = arith.constant 0 : i32
    %c0_i32_0 = arith.constant 0 : i32
    return %arg0, %c0_i32 : i32, i32
  }
  func.func @transform_5(%arg0: i32) -> (i32, i32) {
    %c0_i32 = arith.constant 0 : i32
    %c0_i32_0 = arith.constant 0 : i32
    %c0_i32_1 = arith.constant 0 : i32
    return %c0_i32, %c0_i32_0 : i32, i32
  }
  func.func @transform_6(%arg0: i32) -> (i32, i32) {
    %c0_i32 = arith.constant 0 : i32
    %c0_i32_0 = arith.constant 0 : i32
    %c0_i32_1 = arith.constant 0 : i32
    return %c0_i32, %c0_i32_0 : i32, i32
  }
  func.func @transform_7(%arg0: i32) -> (i32, i32) {
    %c0_i32 = arith.constant 0 : i32
    %c0_i32_0 = arith.constant 0 : i32
    %c0_i32_1 = arith.constant 0 : i32
    return %c0_i32, %c0_i32_0 : i32, i32
  }
  func.func @transform_8(%arg0: i32) -> (i32, i32) {
    %c0_i32 = arith.constant 0 : i32
    %c0_i32_0 = arith.constant 0 : i32
    return %arg0, %c0_i32 : i32, i32
  }
}

</mosaic_0001>

<llo_original>
// kernel: tpu_custom_call.1
$region0: #{tpu_custom_call.1}
  #allocation0 [shape = 'u32[]', space=smem, size = 0x4, offset = 0x4, fixed_abs, tag = 'smem constant byte address 0x4 - core index']
  #allocation1 [shape = 'u32[144,128]{1,0:T(1,128)}', space=vmem, size = 0x12000, scoped, tag = 'internal scratch']
  #allocation2 [shape = 'f32[1]{0:T(128)S(6)}', space=smem, size = 0x200, scoped, tag = 'scoped memory for tpu_custom_call.1']
  %s0 = inlined_call_operand.<no memory space> [shape: f32[1], index: 0, kind: input, shape index: {}]
  %s1 = inlined_call_operand.vmem [shape: f32[256,10], index: 1, kind: input, shape index: {}]
  %s2 = inlined_call_operand.vmem [shape: f32[16,128], index: 2, kind: input, shape index: {}]
  %s3 = inlined_call_operand.vmem [shape: f32[16,128], index: 3, kind: input, shape index: {}]
  %s4 = inlined_call_operand.vmem [shape: f32[16,128], index: 4, kind: input, shape index: {}]
  %s5 = inlined_call_operand.vmem [shape: bf16[128,256], index: 5, kind: input, shape index: {}]
  %s6 = inlined_call_operand.vmem [shape: f32[10,128], index: 6, kind: input, shape index: {}]
  %s7 = inlined_call_operand.vmem [shape: f32[1,10], index: 7, kind: input, shape index: {}]
  %s8 = inlined_call_operand.hbm [shape: f32[16,16], index: 8, kind: output, shape index: {}]
  %s9 = sld [smem:[#allocation0]]
  $region65: #{tpu_custom_call.1} parent=0
    _
  %s11 = ssub.s32 1, %s9
  %s12 = scalar_select 0, %s11, %s9
  %13 = sst [smem:[#allocation2]] %s0
  $region1: #{tpu_custom_call.1} parent=0
    #allocation3 [shape = 'u8[8192]{0}', space=vmem, size = 0x2000, scoped, tag = 'output window, operand 0']
    #allocation4 [shape = 's32[2]{0}', space=sflag, size = 0x8, scoped, tag = 'scoped memory for tpu_custom_call.1']
    %14 = vsyncpa [#allocation4], 0
    %s15 = scalar_lea.sflag [#allocation4], 1
    %16 = vsyncpa %s15, 0
    loop: start=0, step=1, limit=4
    $region2: #{tpu_custom_call.1} parent=1 // loop_pre_header
      _
    $region3: #{tpu_custom_call.1} parent=1 // loop_header
      %s18 = sphi 0, %s22
      %p19 = scmp.ge.s32.totalorder %s18, 4
      %s26 = sphi 0, %s26
      %s28 = sphi 0, %s26
      %s29 = sphi 0, %s28
      %s43 = sphi 0, %s29
      %s49 = sphi 0, %s51
      %s52 = sphi 0, %s49
      %s53 = sphi 0, %s52
      %s69 = sphi 0, %s53
      %s75 = sphi 0, %s77
      %s78 = sphi 0, %s75
      %s79 = sphi 0, %s78
      %s95 = sphi 0, %s79
      %s101 = sphi 0, %s103
      %s104 = sphi 0, %s101
      %s105 = sphi 0, %s104
      %s121 = sphi 0, %s105
      %s127 = sphi 0, %s129
      %s130 = sphi 0, %s127
      %s131 = sphi 0, %s130
      %s147 = sphi 0, %s131
      %s151 = sphi 0, %s151
      %s153 = sphi 0, %s151
      %s154 = sphi 0, %s153
      %s168 = sphi 0, %s154
      %s172 = sphi 0, %s172
      %s174 = sphi 0, %s172
      %s175 = sphi 0, %s174
      %s189 = sphi 0, %s175
      %s193 = sphi 0, %s193
      %s195 = sphi 0, %s193
      %s196 = sphi 0, %s195
      %s210 = sphi 0, %s196
      %s216 = sphi 0, %s218
      %s219 = sphi 0, %s216
      %s220 = sphi 0, %s219
      %s236 = sphi 0, %s220
    $region4: #{tpu_custom_call.1} parent=1 // loop_header_branch
      %21 = sbr.rel (%p19) target = $region8
    $region5: #{tpu_custom_call.1} parent=1 // loop_body
      %s23 = ssub.s32 %s18, 1
      %s24 = ssub.s32 %s18, 2
      %s25 = sadd.s32 %s18, 1
      %s27 = sadd.s32 %s26, 1
      %p30 = scmp.eq.s32.totalorder %s18, 1
      %p31 = scmp.ne.s32.totalorder %s26, %s28
      %p32 = scmp.eq.s32.totalorder %s18, 0
      %p33 = por %p31, %p32
      %p34 = scmp.ne.s32.totalorder %s26, %s28
      %p35 = scmp.eq.s32.totalorder %s23, 1
      %p36 = por %p34, %p35
      %p37 = scmp.ne.s32.totalorder %s28, %s29
      %p38 = scmp.eq.s32.totalorder %s23, 0
      %p39 = por %p37, %p38
      %p40 = scmp.ne.s32.totalorder %s28, %s29
      %p41 = scmp.eq.s32.totalorder %s24, 1
      %p42 = por %p40, %p41
      %p44 = scmp.ne.s32.totalorder %s29, %s43
      %p45 = scmp.eq.s32.totalorder %s24, 0
      %p46 = por %p44, %p45
      %s47 = ssub.s32 %s18, %s25
      %p48 = scmp.eq.s32.totalorder %s47, 0
      %s50 = sadd.s32 %s49, 1
      %s51 = scalar_select %p48, %s49, %s50
      %p54 = pneg %p48
      %p55 = scmp.eq.s32.totalorder %s18, 1
      %p56 = por %p54, %p55
      %p57 = scmp.ne.s32.totalorder %s49, %s52
      %p58 = scmp.eq.s32.totalorder %s18, 0
      %p59 = por %p57, %p58
      %p60 = scmp.ne.s32.totalorder %s49, %s52
      %p61 = scmp.eq.s32.totalorder %s23, 1
      %p62 = por %p60, %p61
      %p63 = scmp.ne.s32.totalorder %s52, %s53
      %p64 = scmp.eq.s32.totalorder %s23, 0
      %p65 = por %p63, %p64
      %p66 = scmp.ne.s32.totalorder %s52, %s53
      %p67 = scmp.eq.s32.totalorder %s24, 1
      %p68 = por %p66, %p67
      %p70 = scmp.ne.s32.totalorder %s53, %s69
      %p71 = scmp.eq.s32.totalorder %s24, 0
      %p72 = por %p70, %p71
      %s73 = ssub.s32 %s18, %s25
      %p74 = scmp.eq.s32.totalorder %s73, 0
      %s76 = sadd.s32 %s75, 1
      %s77 = scalar_select %p74, %s75, %s76
      %p80 = pneg %p74
      %p81 = scmp.eq.s32.totalorder %s18, 1
      %p82 = por %p80, %p81
      %p83 = scmp.ne.s32.totalorder %s75, %s78
      %p84 = scmp.eq.s32.totalorder %s18, 0
      %p85 = por %p83, %p84
      %p86 = scmp.ne.s32.totalorder %s75, %s78
      %p87 = scmp.eq.s32.totalorder %s23, 1
      %p88 = por %p86, %p87
      %p89 = scmp.ne.s32.totalorder %s78, %s79
      %p90 = scmp.eq.s32.totalorder %s23, 0
      %p91 = por %p89, %p90
      %p92 = scmp.ne.s32.totalorder %s78, %s79
      %p93 = scmp.eq.s32.totalorder %s24, 1
      %p94 = por %p92, %p93
      %p96 = scmp.ne.s32.totalorder %s79, %s95
      %p97 = scmp.eq.s32.totalorder %s24, 0
      %p98 = por %p96, %p97
      %s99 = ssub.s32 %s18, %s25
      %p100 = scmp.eq.s32.totalorder %s99, 0
      %s102 = sadd.s32 %s101, 1
      %s103 = scalar_select %p100, %s101, %s102
      %p106 = pneg %p100
      %p107 = scmp.eq.s32.totalorder %s18, 1
      %p108 = por %p106, %p107
      %p109 = scmp.ne.s32.totalorder %s101, %s104
      %p110 = scmp.eq.s32.totalorder %s18, 0
      %p111 = por %p109, %p110
      %p112 = scmp.ne.s32.totalorder %s101, %s104
      %p113 = scmp.eq.s32.totalorder %s23, 1
      %p114 = por %p112, %p113
      %p115 = scmp.ne.s32.totalorder %s104, %s105
      %p116 = scmp.eq.s32.totalorder %s23, 0
      %p117 = por %p115, %p116
      %p118 = scmp.ne.s32.totalorder %s104, %s105
      %p119 = scmp.eq.s32.totalorder %s24, 1
      %p120 = por %p118, %p119
      %p122 = scmp.ne.s32.totalorder %s105, %s121
      %p123 = scmp.eq.s32.totalorder %s24, 0
      %p124 = por %p122, %p123
      %s125 = ssub.s32 %s18, %s25
      %p126 = scmp.eq.s32.totalorder %s125, 0
      %s128 = sadd.s32 %s127, 1
      %s129 = scalar_select %p126, %s127, %s128
      %p132 = pneg %p126
      %p133 = scmp.eq.s32.totalorder %s18, 1
      %p134 = por %p132, %p133
      %p135 = scmp.ne.s32.totalorder %s127, %s130
      %p136 = scmp.eq.s32.totalorder %s18, 0
      %p137 = por %p135, %p136
      %p138 = scmp.ne.s32.totalorder %s127, %s130
      %p139 = scmp.eq.s32.totalorder %s23, 1
      %p140 = por %p138, %p139
      %p141 = scmp.ne.s32.totalorder %s130, %s131
      %p142 = scmp.eq.s32.totalorder %s23, 0
      %p143 = por %p141, %p142
      %p144 = scmp.ne.s32.totalorder %s130, %s131
      %p145 = scmp.eq.s32.totalorder %s24, 1
      %p146 = por %p144, %p145
      %p148 = scmp.ne.s32.totalorder %s131, %s147
      %p149 = scmp.eq.s32.totalorder %s24, 0
      %p150 = por %p148, %p149
      %s152 = sadd.s32 %s151, 1
      %p155 = scmp.eq.s32.totalorder %s18, 1
      %p156 = scmp.ne.s32.totalorder %s151, %s153
      %p157 = scmp.eq.s32.totalorder %s18, 0
      %p158 = por %p156, %p157
      %p159 = scmp.ne.s32.totalorder %s151, %s153
      %p160 = scmp.eq.s32.totalorder %s23, 1
      %p161 = por %p159, %p160
      %p162 = scmp.ne.s32.totalorder %s153, %s154
      %p163 = scmp.eq.s32.totalorder %s23, 0
      %p164 = por %p162, %p163
      %p165 = scmp.ne.s32.totalorder %s153, %s154
      %p166 = scmp.eq.s32.totalorder %s24, 1
      %p167 = por %p165, %p166
      %p169 = scmp.ne.s32.totalorder %s154, %s168
      %p170 = scmp.eq.s32.totalorder %s24, 0
      %p171 = por %p169, %p170
      %s173 = sadd.s32 %s172, 1
      %p176 = scmp.eq.s32.totalorder %s18, 1
      %p177 = scmp.ne.s32.totalorder %s172, %s174
      %p178 = scmp.eq.s32.totalorder %s18, 0
      %p179 = por %p177, %p178
      %p180 = scmp.ne.s32.totalorder %s172, %s174
      %p181 = scmp.eq.s32.totalorder %s23, 1
      %p182 = por %p180, %p181
      %p183 = scmp.ne.s32.totalorder %s174, %s175
      %p184 = scmp.eq.s32.totalorder %s23, 0
      %p185 = por %p183, %p184
      %p186 = scmp.ne.s32.totalorder %s174, %s175
      %p187 = scmp.eq.s32.totalorder %s24, 1
      %p188 = por %p186, %p187
      %p190 = scmp.ne.s32.totalorder %s175, %s189
      %p191 = scmp.eq.s32.totalorder %s24, 0
      %p192 = por %p190, %p191
      %s194 = sadd.s32 %s193, 1
      %p197 = scmp.eq.s32.totalorder %s18, 1
      %p198 = scmp.ne.s32.totalorder %s193, %s195
      %p199 = scmp.eq.s32.totalorder %s18, 0
      %p200 = por %p198, %p199
      %p201 = scmp.ne.s32.totalorder %s193, %s195
      %p202 = scmp.eq.s32.totalorder %s23, 1
      %p203 = por %p201, %p202
      %p204 = scmp.ne.s32.totalorder %s195, %s196
      %p205 = scmp.eq.s32.totalorder %s23, 0
      %p206 = por %p204, %p205
      %p207 = scmp.ne.s32.totalorder %s195, %s196
      %p208 = scmp.eq.s32.totalorder %s24, 1
      %p209 = por %p207, %p208
      %p211 = scmp.ne.s32.totalorder %s196, %s210
      %p212 = scmp.eq.s32.totalorder %s24, 0
      %p213 = por %p211, %p212
      %s214 = ssub.s32 %s18, %s25
      %p215 = scmp.eq.s32.totalorder %s214, 0
      %s217 = sadd.s32 %s216, 1
      %s218 = scalar_select %p215, %s216, %s217
      %p221 = pneg %p215
      %p222 = scmp.eq.s32.totalorder %s18, 1
      %p223 = por %p221, %p222
      %p224 = scmp.ne.s32.totalorder %s216, %s219
      %p225 = scmp.eq.s32.totalorder %s18, 0
      %p226 = por %p224, %p225
      %p227 = scmp.ne.s32.totalorder %s216, %s219
      %p228 = scmp.eq.s32.totalorder %s23, 1
      %p229 = por %p227, %p228
      %p230 = scmp.ne.s32.totalorder %s219, %s220
      %p231 = scmp.eq.s32.totalorder %s23, 0
      %p232 = por %p230, %p231
      %p233 = scmp.ne.s32.totalorder %s219, %s220
      %p234 = scmp.eq.s32.totalorder %s24, 1
      %p235 = por %p233, %p234
      %p237 = scmp.ne.s32.totalorder %s220, %s236
      %p238 = scmp.eq.s32.totalorder %s24, 0
      %p239 = por %p237, %p238
      %p240 = scmp.le.s32.totalorder 1, %s18
      %p241 = scmp.lt.s32.totalorder %s18, 3
      %p242 = pnand %p240, %p241
      %p243 = pneg %p242
      // Predicated region
      $region9: #{tpu_custom_call.1} parent=5 // pred_check
        _
      $region10: #{tpu_custom_call.1} parent=5 // pred_check_branch
        %245 = sbr.rel (%p242) target = $region12
      $region11: #{tpu_custom_call.1} parent=5 // pred_region
        %s246 = ssub.s32 %s18, 1
        // Predicated region
        $region13: #{tpu_custom_call.1} parent=11 // pred_check
          %p247 = pneg %p39
        $region14: #{tpu_custom_call.1} parent=11 // pred_check_branch
          %249 = sbr.rel (%p247) target = $region16
        $region15: #{tpu_custom_call.1} parent=11 // pred_region
          _
        $region16: #{tpu_custom_call.1} parent=11 // pred_fallthru
          _
        // Predicated region
        $region17: #{tpu_custom_call.1} parent=11 // pred_check
          %p250 = pneg %p164
        $region18: #{tpu_custom_call.1} parent=11 // pred_check_branch
          %252 = sbr.rel (%p250) target = $region20
        $region19: #{tpu_custom_call.1} parent=11 // pred_region
          _
        $region20: #{tpu_custom_call.1} parent=11 // pred_fallthru
          _
        // Predicated region
        $region21: #{tpu_custom_call.1} parent=11 // pred_check
          %p253 = pneg %p185
        $region22: #{tpu_custom_call.1} parent=11 // pred_check_branch
          %255 = sbr.rel (%p253) target = $region24
        $region23: #{tpu_custom_call.1} parent=11 // pred_region
          _
        $region24: #{tpu_custom_call.1} parent=11 // pred_fallthru
          _
        // Predicated region
        $region25: #{tpu_custom_call.1} parent=11 // pred_check
          %p256 = pneg %p206
        $region26: #{tpu_custom_call.1} parent=11 // pred_check_branch
          %258 = sbr.rel (%p256) target = $region28
        $region27: #{tpu_custom_call.1} parent=11 // pred_region
          _
        $region28: #{tpu_custom_call.1} parent=11 // pred_fallthru
          _
      $region12: #{tpu_custom_call.1} parent=5 // pred_fallthru
        _
      %p259 = scmp.lt.s32.totalorder %s18, 2
      // Predicated region
      $region29: #{tpu_custom_call.1} parent=5 // pred_check
        %p260 = pneg %p259
      $region30: #{tpu_custom_call.1} parent=5 // pred_check_branch
        %262 = sbr.rel (%p260) target = $region32
      $region31: #{tpu_custom_call.1} parent=5 // pred_region
        // Predicated region
        $region33: #{tpu_custom_call.1} parent=31 // pred_check
          %p263 = pneg %p59
        $region34: #{tpu_custom_call.1} parent=31 // pred_check_branch
          %265 = sbr.rel (%p263) target = $region36
        $region35: #{tpu_custom_call.1} parent=31 // pred_region
          %s266 = smul.u32 16, %s18
          %p267 = scmp.lt.s32.totalorder %s266, 31
          %s268 = scalar_select %p267, %s266, 31
          %s269 = smul.addr %s268, 8
          %s270 = scalar_lea.vmem %s1, %s269
          %s271 = smul.u32 16, %s18
        $region36: #{tpu_custom_call.1} parent=31 // pred_fallthru
          _
        // Predicated region
        $region37: #{tpu_custom_call.1} parent=31 // pred_check
          %p272 = pneg %p85
        $region38: #{tpu_custom_call.1} parent=31 // pred_check_branch
          %274 = sbr.rel (%p272) target = $region40
        $region39: #{tpu_custom_call.1} parent=31 // pred_region
          %p275 = scmp.lt.s32.totalorder %s18, 1
          %s276 = scalar_select %p275, %s18, 1
          %s277 = smul.addr %s276, 8
          %s278 = scalar_lea.vmem %s2, %s277
        $region40: #{tpu_custom_call.1} parent=31 // pred_fallthru
          _
        // Predicated region
        $region41: #{tpu_custom_call.1} parent=31 // pred_check
          %p279 = pneg %p111
        $region42: #{tpu_custom_call.1} parent=31 // pred_check_branch
          %281 = sbr.rel (%p279) target = $region44
        $region43: #{tpu_custom_call.1} parent=31 // pred_region
          %p282 = scmp.lt.s32.totalorder %s18, 1
          %s283 = scalar_select %p282, %s18, 1
          %s284 = smul.addr %s283, 8
          %s285 = scalar_lea.vmem %s3, %s284
        $region44: #{tpu_custom_call.1} parent=31 // pred_fallthru
          _
        // Predicated region
        $region45: #{tpu_custom_call.1} parent=31 // pred_check
          %p286 = pneg %p137
        $region46: #{tpu_custom_call.1} parent=31 // pred_check_branch
          %288 = sbr.rel (%p286) target = $region48
        $region47: #{tpu_custom_call.1} parent=31 // pred_region
          %p289 = scmp.lt.s32.totalorder %s18, 1
          %s290 = scalar_select %p289, %s18, 1
          %s291 = smul.addr %s290, 8
          %s292 = scalar_lea.vmem %s4, %s291
        $region48: #{tpu_custom_call.1} parent=31 // pred_fallthru
          _
      $region32: #{tpu_custom_call.1} parent=5 // pred_fallthru
        _
      %p293 = scmp.le.s32.totalorder 1, %s18
      %p294 = scmp.lt.s32.totalorder %s18, 3
      %p295 = pnand %p293, %p294
      %p296 = pneg %p295
      // Predicated region
      $region49: #{tpu_custom_call.1} parent=5 // pred_check
        _
      $region50: #{tpu_custom_call.1} parent=5 // pred_check_branch
        %298 = sbr.rel (%p295) target = $region52
      $region51: #{tpu_custom_call.1} parent=5 // pred_region
        %s299 = ssub.s32 %s18, 1
        %p300 = pneg %p39
        %p301 = pneg %p36
        %s302 = smul.u32 16, %s23
        %p303 = scmp.lt.s32.totalorder %s302, 31
        %s304 = scalar_select %p303, %s302, 31
        %s305 = smul.addr %s304, 8
        %s306 = scalar_lea.vmem %s1, %s305
        %p307 = pneg %p65
        %p308 = pneg %p62
        %p309 = scmp.lt.s32.totalorder %s23, 1
        %s310 = scalar_select %p309, %s23, 1
        %s311 = smul.addr %s310, 8
        %s312 = scalar_lea.vmem %s2, %s311
        %p313 = pneg %p91
        %p314 = pneg %p88
        %p315 = scmp.lt.s32.totalorder %s23, 1
        %s316 = scalar_select %p315, %s23, 1
        %s317 = smul.addr %s316, 8
        %s318 = scalar_lea.vmem %s3, %s317
        %p319 = pneg %p117
        %p320 = pneg %p114
        %p321 = scmp.lt.s32.totalorder %s23, 1
        %s322 = scalar_select %p321, %s23, 1
        %s323 = smul.addr %s322, 8
        %s324 = scalar_lea.vmem %s4, %s323
        %p325 = pneg %p143
        %p326 = pneg %p140
        %p327 = pneg %p164
        %p328 = pneg %p161
        %p329 = pneg %p185
        %p330 = pneg %p182
        %p331 = pneg %p206
        %p332 = pneg %p203
        %p333 = pneg %p232
        %p334 = pneg %p229
        %s335 = sand.u32 %s219, 1
        %s336 = scalar_lea.sflag [#allocation4], %s335
        %s337 = sand.u32 %s219, 1
        %s338 = smul.addr %s337, 8
        %s339 = scalar_lea.vmem [#allocation3], %s338
        %s340 = smul.u32 16, %s23
        %p341 = scmp.lt.s32.totalorder %s340, 31
        %s342 = scalar_select %p341, %s340, 31
        %s343 = smul.addr %s342, 8
        %s344 = scalar_lea.vmem %s1, %s343
        %s345 = smul.u32 16, %s23
        %p346 = scmp.lt.s32.totalorder %s23, 1
        %s347 = scalar_select %p346, %s23, 1
        %s348 = smul.addr %s347, 8
        %s349 = scalar_lea.vmem %s2, %s348
        %p350 = scmp.lt.s32.totalorder %s23, 1
        %s351 = scalar_select %p350, %s23, 1
        %s352 = smul.addr %s351, 8
        %s353 = scalar_lea.vmem %s3, %s352
        %p354 = scmp.lt.s32.totalorder %s23, 1
        %s355 = scalar_select %p354, %s23, 1
        %s356 = smul.addr %s355, 8
        %s357 = scalar_lea.vmem %s4, %s356
        %s359 = sld [smem:[#allocation2]]
        %v360 = vld [vmem:[%s344] sm:$0xff]
        %v361 = vld [vmem:[%s344 + $0x8] sm:$0xff]
        %v362 = vld [vmem:[%s344 + $0x10] sm:$0xff]
        %v363 = vld [vmem:[%s344 + $0x18] sm:$0xff]
        %v364 = vld [vmem:[%s344 + $0x20] sm:$0xff]
        %v365 = vld [vmem:[%s344 + $0x28] sm:$0xff]
        %v366 = vld [vmem:[%s344 + $0x30] sm:$0xff]
        %v367 = vld [vmem:[%s344 + $0x38] sm:$0xff]
        %v368 = vld [vmem:[%s344 + $0x40] sm:$0xff]
        %v369 = vld [vmem:[%s344 + $0x48] sm:$0xff]
        %v370 = vld [vmem:[%s344 + $0x50] sm:$0xff]
        %v371 = vld [vmem:[%s344 + $0x58] sm:$0xff]
        %v372 = vld [vmem:[%s344 + $0x60] sm:$0xff]
        %v373 = vld [vmem:[%s344 + $0x68] sm:$0xff]
        %v374 = vld [vmem:[%s344 + $0x70] sm:$0xff]
        %v375 = vld [vmem:[%s344 + $0x78] sm:$0xff]
        %v376 = vld [vmem:[%s6] sm:$0xff]
        %v377 = vld [vmem:[%s6 + $0x8] sm:$0x3]
        %vm378 = vcmask 80896
        %v380 = vsel %vm378, %v360, 0
        %v383 = vsel %vm378, %v361, 0
        %v386 = vsel %vm378, %v362, 0
        %v389 = vsel %vm378, %v363, 0
        %v392 = vsel %vm378, %v364, 0
        %v395 = vsel %vm378, %v365, 0
        %v398 = vsel %vm378, %v366, 0
        %v401 = vsel %vm378, %v367, 0
        %v404 = vsel %vm378, %v368, 0
        %v407 = vsel %vm378, %v369, 0
        %v410 = vsel %vm378, %v370, 0
        %v413 = vsel %vm378, %v371, 0
        %v416 = vsel %vm378, %v372, 0
        %v419 = vsel %vm378, %v373, 0
        %v422 = vsel %vm378, %v374, 0
        %v425 = vsel %vm378, %v375, 0
        %vm427 = vcmask 1041408
        %v429 = vsel %vm427, %v377, 0
        %431 = vmatprep.subr.mxu0 0.0
        %432 = vmatpush1.msra.mxu0 %v376
        %433 = vmatprep.subr.mxu0 0.0
        %434 = vmatpush1.msra.mxu0 %v429
        %435 = vmatprep.subr.mxu0 0.0
        %436 = vmatpush1.msra.mxu0 0.0
        %437 = vmatprep.subr.mxu0 0.0
        %438 = vmatpush1.msra.mxu0 0.0
        %439 = vmatprep.subr.mxu0 0.0
        %440 = vmatpush1.msra.mxu0 0.0
        %441 = vmatprep.subr.mxu0 0.0
        %442 = vmatpush1.msra.mxu0 0.0
        %443 = vmatprep.subr.mxu0 0.0
        %444 = vmatpush1.msra.mxu0 0.0
        %445 = vmatprep.subr.mxu0 0.0
        %446 = vmatpush1.msra.mxu0 0.0
        %447 = vmatprep.subr.mxu0 0.0
        %448 = vmatpush1.msra.mxu0 0.0
        %449 = vmatprep.subr.mxu0 0.0
        %450 = vmatpush1.msra.mxu0 0.0
        %451 = vmatprep.subr.mxu0 0.0
        %452 = vmatpush1.msra.mxu0 0.0
        %453 = vmatprep.subr.mxu0 0.0
        %454 = vmatpush1.msra.mxu0 0.0
        %455 = vmatprep.subr.mxu0 0.0
        %456 = vmatpush1.msra.mxu0 0.0
        %457 = vmatprep.subr.mxu0 0.0
        %458 = vmatpush1.msra.mxu0 0.0
        %459 = vmatprep.subr.mxu0 0.0
        %460 = vmatpush1.msra.mxu0 0.0
        %461 = vmatprep.subr.mxu0 0.0
        %462 = vmatpush1.msra.mxu0 0.0
        %463 = vmatprep.subr.mxu0 0.0
        %464 = vmatpush1.msra.mxu0 0.0
        %465 = vmatprep.subr.mxu0 0.0
        %466 = vmatpush1.msra.mxu0 0.0
        %467 = vmatprep.subr.mxu0 0.0
        %468 = vmatpush1.msra.mxu0 0.0
        %469 = vmatprep.subr.mxu0 0.0
        %470 = vmatpush1.msra.mxu0 0.0
        %471 = vmatprep.subr.mxu0 0.0
        %472 = vmatpush1.msra.mxu0 0.0
        %473 = vmatprep.subr.mxu0 0.0
        %474 = vmatpush1.msra.mxu0 0.0
        %475 = vmatprep.subr.mxu0 0.0
        %476 = vmatpush1.msra.mxu0 0.0
        %477 = vmatprep.subr.mxu0 0.0
        %478 = vmatpush1.msra.mxu0 0.0
        %479 = vmatprep.subr.mxu0 0.0
        %480 = vmatpush1.msra.mxu0 0.0
        %481 = vmatprep.subr.mxu0 0.0
        %482 = vmatpush1.msra.mxu0 0.0
        %483 = vmatprep.subr.mxu0 0.0
        %484 = vmatpush1.msra.mxu0 0.0
        %485 = vmatprep.subr.mxu0 0.0
        %486 = vmatpush1.msra.mxu0 0.0
        %487 = vmatprep.subr.mxu0 0.0
        %488 = vmatpush1.msra.mxu0 0.0
        %489 = vmatprep.subr.mxu0 0.0
        %490 = vmatpush1.msra.mxu0 0.0
        %491 = vmatprep.subr.mxu0 0.0
        %492 = vmatpush1.msra.mxu0 0.0
        %493 = vmatprep.subr.mxu0 0.0
        %494 = vmatpush1.msra.mxu0 0.0
        %495 = vmatprep.mubr.f32.mxu0 0.0
        %496 = vmatmul.mubr.f32.gmra.mrb[0].mxu0 %v380
        %v497 = vpop.f32.mrb[0].mxu0
        %v498 = vadd.f32 0.0, %v497
        %v499 = vpop.f32.mrb[0].mxu0
        %500 = vmatprep.mubr.f32.mxu0 0.0
        %501 = vmatmul.mubr.f32.gmra.mrb[0].mxu0 %v383
        %v502 = vpop.f32.mrb[0].mxu0
        %v503 = vadd.f32 0.0, %v502
        %v504 = vpop.f32.mrb[0].mxu0
        %505 = vmatprep.mubr.f32.mxu0 0.0
        %506 = vmatmul.mubr.f32.gmra.mrb[0].mxu0 %v386
        %v507 = vpop.f32.mrb[0].mxu0
        %v508 = vadd.f32 0.0, %v507
        %v509 = vpop.f32.mrb[0].mxu0
        %510 = vmatprep.mubr.f32.mxu0 0.0
        %511 = vmatmul.mubr.f32.gmra.mrb[0].mxu0 %v389
        %v512 = vpop.f32.mrb[0].mxu0
        %v513 = vadd.f32 0.0, %v512
        %v514 = vpop.f32.mrb[0].mxu0
        %515 = vmatprep.mubr.f32.mxu0 0.0
        %516 = vmatmul.mubr.f32.gmra.mrb[0].mxu0 %v392
        %v517 = vpop.f32.mrb[0].mxu0
        %v518 = vadd.f32 0.0, %v517
        %v519 = vpop.f32.mrb[0].mxu0
        %520 = vmatprep.mubr.f32.mxu0 0.0
        %521 = vmatmul.mubr.f32.gmra.mrb[0].mxu0 %v395
        %v522 = vpop.f32.mrb[0].mxu0
        %v523 = vadd.f32 0.0, %v522
        %v524 = vpop.f32.mrb[0].mxu0
        %525 = vmatprep.mubr.f32.mxu0 0.0
        %526 = vmatmul.mubr.f32.gmra.mrb[0].mxu0 %v398
        %v527 = vpop.f32.mrb[0].mxu0
        %v528 = vadd.f32 0.0, %v527
        %v529 = vpop.f32.mrb[0].mxu0
        %530 = vmatprep.mubr.f32.mxu0 0.0
        %531 = vmatmul.mubr.f32.gmra.mrb[0].mxu0 %v401
        %v532 = vpop.f32.mrb[0].mxu0
        %v533 = vadd.f32 0.0, %v532
        %v534 = vpop.f32.mrb[0].mxu0
        %535 = vmatprep.mubr.f32.mxu0 0.0
        %536 = vmatmul.mubr.f32.gmra.mrb[0].mxu0 %v404
        %v537 = vpop.f32.mrb[0].mxu0
        %v538 = vadd.f32 0.0, %v537
        %v539 = vpop.f32.mrb[0].mxu0
        %540 = vmatprep.mubr.f32.mxu0 0.0
        %541 = vmatmul.mubr.f32.gmra.mrb[0].mxu0 %v407
        %v542 = vpop.f32.mrb[0].mxu0
        %v543 = vadd.f32 0.0, %v542
        %v544 = vpop.f32.mrb[0].mxu0
        %545 = vmatprep.mubr.f32.mxu0 0.0
        %546 = vmatmul.mubr.f32.gmra.mrb[0].mxu0 %v410
        %v547 = vpop.f32.mrb[0].mxu0
        %v548 = vadd.f32 0.0, %v547
        %v549 = vpop.f32.mrb[0].mxu0
        %550 = vmatprep.mubr.f32.mxu0 0.0
        %551 = vmatmul.mubr.f32.gmra.mrb[0].mxu0 %v413
        %v552 = vpop.f32.mrb[0].mxu0
        %v553 = vadd.f32 0.0, %v552
        %v554 = vpop.f32.mrb[0].mxu0
        %555 = vmatprep.mubr.f32.mxu0 0.0
        %556 = vmatmul.mubr.f32.gmra.mrb[0].mxu0 %v416
        %v557 = vpop.f32.mrb[0].mxu0
        %v558 = vadd.f32 0.0, %v557
        %v559 = vpop.f32.mrb[0].mxu0
        %560 = vmatprep.mubr.f32.mxu0 0.0
        %561 = vmatmul.mubr.f32.gmra.mrb[0].mxu0 %v419
        %v562 = vpop.f32.mrb[0].mxu0
        %v563 = vadd.f32 0.0, %v562
        %v564 = vpop.f32.mrb[0].mxu0
        %565 = vmatprep.mubr.f32.mxu0 0.0
        %566 = vmatmul.mubr.f32.gmra.mrb[0].mxu0 %v422
        %v567 = vpop.f32.mrb[0].mxu0
        %v568 = vadd.f32 0.0, %v567
        %v569 = vpop.f32.mrb[0].mxu0
        %570 = vmatprep.mubr.f32.mxu0 0.0
        %571 = vmatmul.mubr.f32.gmra.mrb[0].mxu0 %v425
        %v572 = vpop.f32.mrb[0].mxu0
        %v573 = vadd.f32 0.0, %v572
        %v574 = vpop.f32.mrb[0].mxu0
        %575 = vdwg.mxu0
        %v576 = vld [vmem:[%s349] sm:$0xff]
        %v577 = vld [vmem:[%s353] sm:$0xff]
        %v578 = vld [vmem:[%s357] sm:$0xff]
        %v580 = vcombine.high %v576, %v576
        %v582 = vunpack.c.l.s4 1966171168
        %v583 = vunpack.c.0.s8 %v582
        %v584 = vlaneseq
        %v585 = vshrl.u32 %v584, 7
        %v586 = vsub.s32 %v583, %v585
        %v587 = vrot.slane %v576, %v586
        %v589 = vunpack.c.l.s4 1966171168
        %v590 = vunpack.c.0.s8 %v589
        %v591 = vlaneseq
        %v592 = vshrl.u32 %v591, 7
        %v593 = vsub.s32 %v590, %v592
        %v594 = vrot.slane %v580, %v593
        %v595 = vcombine.high %v587, %v587
        %v596 = vcombine.high %v594, %v594
        %v598 = vunpack.c.l.s4 1966171168
        %v599 = vunpack.c.0.s8 %v598
        %v600 = vlaneseq
        %v601 = vshrl.u32 %v600, 7
        %v602 = vsub.s32 %v599, %v601
        %v603 = vrot.slane %v587, %v602
        %v605 = vunpack.c.l.s4 1966171168
        %v606 = vunpack.c.0.s8 %v605
        %v607 = vlaneseq
        %v608 = vshrl.u32 %v607, 7
        %v609 = vsub.s32 %v606, %v608
        %v610 = vrot.slane %v594, %v609
        %v612 = vunpack.c.l.s4 1966171168
        %v613 = vunpack.c.0.s8 %v612
        %v614 = vlaneseq
        %v615 = vshrl.u32 %v614, 7
        %v616 = vsub.s32 %v613, %v615
        %v617 = vrot.slane %v595, %v616
        %v619 = vunpack.c.l.s4 1966171168
        %v620 = vunpack.c.0.s8 %v619
        %v621 = vlaneseq
        %v622 = vshrl.u32 %v621, 7
        %v623 = vsub.s32 %v620, %v622
        %v624 = vrot.slane %v596, %v623
        %v625 = vcombine.high %v603, %v603
        %v626 = vcombine.high %v610, %v610
        %v627 = vcombine.high %v617, %v617
        %v628 = vcombine.high %v624, %v624
        %v629 = vlaneseq
        %v630 = vshrl.u32 %v629, 7
        %v631 = vsub.s32 0, %v630
        %v632 = vrot.slane %v603, %v631
        %v633 = vlaneseq
        %v634 = vshrl.u32 %v633, 7
        %v635 = vsub.s32 0, %v634
        %v636 = vrot.slane %v617, %v635
        %v637 = vlaneseq
        %v638 = vshrl.u32 %v637, 7
        %v639 = vsub.s32 0, %v638
        %v640 = vrot.slane %v625, %v639
        %v641 = vlaneseq
        %v642 = vshrl.u32 %v641, 7
        %v643 = vsub.s32 0, %v642
        %v644 = vrot.slane %v627, %v643
        %v645 = vlaneseq
        %v646 = vshrl.u32 %v645, 7
        %v647 = vsub.s32 0, %v646
        %v648 = vrot.slane %v610, %v647
        %v649 = vlaneseq
        %v650 = vshrl.u32 %v649, 7
        %v651 = vsub.s32 0, %v650
        %v652 = vrot.slane %v624, %v651
        %v653 = vlaneseq
        %v654 = vshrl.u32 %v653, 7
        %v655 = vsub.s32 0, %v654
        %v656 = vrot.slane %v626, %v655
        %v657 = vlaneseq
        %v658 = vshrl.u32 %v657, 7
        %v659 = vsub.s32 0, %v658
        %v660 = vrot.slane %v628, %v659
        %v669 = vmul.f32 %v498, %v632
        %v670 = vmul.f32 %v503, %v632
        %v671 = vmul.f32 %v508, %v636
        %v672 = vmul.f32 %v513, %v636
        %v673 = vmul.f32 %v518, %v640
        %v674 = vmul.f32 %v523, %v640
        %v675 = vmul.f32 %v528, %v644
        %v676 = vmul.f32 %v533, %v644
        %v677 = vmul.f32 %v538, %v648
        %v678 = vmul.f32 %v543, %v648
        %v679 = vmul.f32 %v548, %v652
        %v680 = vmul.f32 %v553, %v652
        %v681 = vmul.f32 %v558, %v656
        %v682 = vmul.f32 %v563, %v656
        %v683 = vmul.f32 %v568, %v660
        %v684 = vmul.f32 %v573, %v660
        %v685 = vmax.f32 %v669, 0.0
        %v686 = vmax.f32 %v670, 0.0
        %v687 = vmax.f32 %v671, 0.0
        %v688 = vmax.f32 %v672, 0.0
        %v689 = vmax.f32 %v673, 0.0
        %v690 = vmax.f32 %v674, 0.0
        %v691 = vmax.f32 %v675, 0.0
        %v692 = vmax.f32 %v676, 0.0
        %v693 = vmax.f32 %v677, 0.0
        %v694 = vmax.f32 %v678, 0.0
        %v695 = vmax.f32 %v679, 0.0
        %v696 = vmax.f32 %v680, 0.0
        %v697 = vmax.f32 %v681, 0.0
        %v698 = vmax.f32 %v682, 0.0
        %v699 = vmax.f32 %v683, 0.0
        %v700 = vmax.f32 %v684, 0.0
        %v702 = vcombine.high %v577, %v577
        %v704 = vunpack.c.l.s4 1966171168
        %v705 = vunpack.c.0.s8 %v704
        %v706 = vlaneseq
        %v707 = vshrl.u32 %v706, 7
        %v708 = vsub.s32 %v705, %v707
        %v709 = vrot.slane %v577, %v708
        %v711 = vunpack.c.l.s4 1966171168
        %v712 = vunpack.c.0.s8 %v711
        %v713 = vlaneseq
        %v714 = vshrl.u32 %v713, 7
        %v715 = vsub.s32 %v712, %v714
        %v716 = vrot.slane %v702, %v715
        %v717 = vcombine.high %v709, %v709
        %v718 = vcombine.high %v716, %v716
        %v720 = vunpack.c.l.s4 1966171168
        %v721 = vunpack.c.0.s8 %v720
        %v722 = vlaneseq
        %v723 = vshrl.u32 %v722, 7
        %v724 = vsub.s32 %v721, %v723
        %v725 = vrot.slane %v709, %v724
        %v727 = vunpack.c.l.s4 1966171168
        %v728 = vunpack.c.0.s8 %v727
        %v729 = vlaneseq
        %v730 = vshrl.u32 %v729, 7
        %v731 = vsub.s32 %v728, %v730
        %v732 = vrot.slane %v716, %v731
        %v734 = vunpack.c.l.s4 1966171168
        %v735 = vunpack.c.0.s8 %v734
        %v736 = vlaneseq
        %v737 = vshrl.u32 %v736, 7
        %v738 = vsub.s32 %v735, %v737
        %v739 = vrot.slane %v717, %v738
        %v741 = vunpack.c.l.s4 1966171168
        %v742 = vunpack.c.0.s8 %v741
        %v743 = vlaneseq
        %v744 = vshrl.u32 %v743, 7
        %v745 = vsub.s32 %v742, %v744
        %v746 = vrot.slane %v718, %v745
        %v747 = vcombine.high %v725, %v725
        %v748 = vcombine.high %v732, %v732
        %v749 = vcombine.high %v739, %v739
        %v750 = vcombine.high %v746, %v746
        %v751 = vlaneseq
        %v752 = vshrl.u32 %v751, 7
        %v753 = vsub.s32 0, %v752
        %v754 = vrot.slane %v725, %v753
        %v755 = vlaneseq
        %v756 = vshrl.u32 %v755, 7
        %v757 = vsub.s32 0, %v756
        %v758 = vrot.slane %v739, %v757
        %v759 = vlaneseq
        %v760 = vshrl.u32 %v759, 7
        %v761 = vsub.s32 0, %v760
        %v762 = vrot.slane %v747, %v761
        %v763 = vlaneseq
        %v764 = vshrl.u32 %v763, 7
        %v765 = vsub.s32 0, %v764
        %v766 = vrot.slane %v749, %v765
        %v767 = vlaneseq
        %v768 = vshrl.u32 %v767, 7
        %v769 = vsub.s32 0, %v768
        %v770 = vrot.slane %v732, %v769
        %v771 = vlaneseq
        %v772 = vshrl.u32 %v771, 7
        %v773 = vsub.s32 0, %v772
        %v774 = vrot.slane %v746, %v773
        %v775 = vlaneseq
        %v776 = vshrl.u32 %v775, 7
        %v777 = vsub.s32 0, %v776
        %v778 = vrot.slane %v748, %v777
        %v779 = vlaneseq
        %v780 = vshrl.u32 %v779, 7
        %v781 = vsub.s32 0, %v780
        %v782 = vrot.slane %v750, %v781
        %v791 = vmul.f32 %v685, %v754
        %v792 = vmul.f32 %v686, %v754
        %v793 = vmul.f32 %v687, %v758
        %v794 = vmul.f32 %v688, %v758
        %v795 = vmul.f32 %v689, %v762
        %v796 = vmul.f32 %v690, %v762
        %v797 = vmul.f32 %v691, %v766
        %v798 = vmul.f32 %v692, %v766
        %v799 = vmul.f32 %v693, %v770
        %v800 = vmul.f32 %v694, %v770
        %v801 = vmul.f32 %v695, %v774
        %v802 = vmul.f32 %v696, %v774
        %v803 = vmul.f32 %v697, %v778
        %v804 = vmul.f32 %v698, %v778
        %v805 = vmul.f32 %v699, %v782
        %v806 = vmul.f32 %v700, %v782
        %v808 = vcombine.high %v578, %v578
        %v810 = vunpack.c.l.s4 1966171168
        %v811 = vunpack.c.0.s8 %v810
        %v812 = vlaneseq
        %v813 = vshrl.u32 %v812, 7
        %v814 = vsub.s32 %v811, %v813
        %v815 = vrot.slane %v578, %v814
        %v817 = vunpack.c.l.s4 1966171168
        %v818 = vunpack.c.0.s8 %v817
        %v819 = vlaneseq
        %v820 = vshrl.u32 %v819, 7
        %v821 = vsub.s32 %v818, %v820
        %v822 = vrot.slane %v808, %v821
        %v823 = vcombine.high %v815, %v815
        %v824 = vcombine.high %v822, %v822
        %v826 = vunpack.c.l.s4 1966171168
        %v827 = vunpack.c.0.s8 %v826
        %v828 = vlaneseq
        %v829 = vshrl.u32 %v828, 7
        %v830 = vsub.s32 %v827, %v829
        %v831 = vrot.slane %v815, %v830
        %v833 = vunpack.c.l.s4 1966171168
        %v834 = vunpack.c.0.s8 %v833
        %v835 = vlaneseq
        %v836 = vshrl.u32 %v835, 7
        %v837 = vsub.s32 %v834, %v836
        %v838 = vrot.slane %v822, %v837
        %v840 = vunpack.c.l.s4 1966171168
        %v841 = vunpack.c.0.s8 %v840
        %v842 = vlaneseq
        %v843 = vshrl.u32 %v842, 7
        %v844 = vsub.s32 %v841, %v843
        %v845 = vrot.slane %v823, %v844
        %v847 = vunpack.c.l.s4 1966171168
        %v848 = vunpack.c.0.s8 %v847
        %v849 = vlaneseq
        %v850 = vshrl.u32 %v849, 7
        %v851 = vsub.s32 %v848, %v850
        %v852 = vrot.slane %v824, %v851
        %v853 = vcombine.high %v831, %v831
        %v854 = vcombine.high %v838, %v838
        %v855 = vcombine.high %v845, %v845
        %v856 = vcombine.high %v852, %v852
        %v857 = vlaneseq
        %v858 = vshrl.u32 %v857, 7
        %v859 = vsub.s32 0, %v858
        %v860 = vrot.slane %v831, %v859
        %v861 = vlaneseq
        %v862 = vshrl.u32 %v861, 7
        %v863 = vsub.s32 0, %v862
        %v864 = vrot.slane %v845, %v863
        %v865 = vlaneseq
        %v866 = vshrl.u32 %v865, 7
        %v867 = vsub.s32 0, %v866
        %v868 = vrot.slane %v853, %v867
        %v869 = vlaneseq
        %v870 = vshrl.u32 %v869, 7
        %v871 = vsub.s32 0, %v870
        %v872 = vrot.slane %v855, %v871
        %v873 = vlaneseq
        %v874 = vshrl.u32 %v873, 7
        %v875 = vsub.s32 0, %v874
        %v876 = vrot.slane %v838, %v875
        %v877 = vlaneseq
        %v878 = vshrl.u32 %v877, 7
        %v879 = vsub.s32 0, %v878
        %v880 = vrot.slane %v852, %v879
        %v881 = vlaneseq
        %v882 = vshrl.u32 %v881, 7
        %v883 = vsub.s32 0, %v882
        %v884 = vrot.slane %v854, %v883
        %v885 = vlaneseq
        %v886 = vshrl.u32 %v885, 7
        %v887 = vsub.s32 0, %v886
        %v888 = vrot.slane %v856, %v887
        %v897 = vmul.f32 %v669, %v860
        %v898 = vmul.f32 %v670, %v860
        %v899 = vmul.f32 %v671, %v864
        %v900 = vmul.f32 %v672, %v864
        %v901 = vmul.f32 %v673, %v868
        %v902 = vmul.f32 %v674, %v868
        %v903 = vmul.f32 %v675, %v872
        %v904 = vmul.f32 %v676, %v872
        %v905 = vmul.f32 %v677, %v876
        %v906 = vmul.f32 %v678, %v876
        %v907 = vmul.f32 %v679, %v880
        %v908 = vmul.f32 %v680, %v880
        %v909 = vmul.f32 %v681, %v884
        %v910 = vmul.f32 %v682, %v884
        %v911 = vmul.f32 %v683, %v888
        %v912 = vmul.f32 %v684, %v888
        %v913 = vsub.f32 %v791, %v897
        %v914 = vsub.f32 %v792, %v898
        %v915 = vsub.f32 %v793, %v899
        %v916 = vsub.f32 %v794, %v900
        %v917 = vsub.f32 %v795, %v901
        %v918 = vsub.f32 %v796, %v902
        %v919 = vsub.f32 %v797, %v903
        %v920 = vsub.f32 %v798, %v904
        %v921 = vsub.f32 %v799, %v905
        %v922 = vsub.f32 %v800, %v906
        %v923 = vsub.f32 %v801, %v907
        %v924 = vsub.f32 %v802, %v908
        %v925 = vsub.f32 %v803, %v909
        %v926 = vsub.f32 %v804, %v910
        %v927 = vsub.f32 %v805, %v911
        %v928 = vsub.f32 %v806, %v912
        %929 = vadd.xlane.f32.xlu0 %v913
        %v930 = vpop.xlane.xlu0 %929
        %931 = vadd.xlane.f32.xlu0 %v914
        %v932 = vpop.xlane.xlu0 %931
        %933 = vadd.xlane.f32.xlu0 %v915
        %v934 = vpop.xlane.xlu0 %933
        %935 = vadd.xlane.f32.xlu0 %v916
        %v936 = vpop.xlane.xlu0 %935
        %937 = vadd.xlane.f32.xlu0 %v917
        %v938 = vpop.xlane.xlu0 %937
        %939 = vadd.xlane.f32.xlu0 %v918
        %v940 = vpop.xlane.xlu0 %939
        %941 = vadd.xlane.f32.xlu0 %v919
        %v942 = vpop.xlane.xlu0 %941
        %943 = vadd.xlane.f32.xlu0 %v920
        %v944 = vpop.xlane.xlu0 %943
        %945 = vadd.xlane.f32.xlu0 %v921
        %v946 = vpop.xlane.xlu0 %945
        %947 = vadd.xlane.f32.xlu0 %v922
        %v948 = vpop.xlane.xlu0 %947
        %949 = vadd.xlane.f32.xlu0 %v923
        %v950 = vpop.xlane.xlu0 %949
        %951 = vadd.xlane.f32.xlu0 %v924
        %v952 = vpop.xlane.xlu0 %951
        %953 = vadd.xlane.f32.xlu0 %v925
        %v954 = vpop.xlane.xlu0 %953
        %955 = vadd.xlane.f32.xlu0 %v926
        %v956 = vpop.xlane.xlu0 %955
        %957 = vadd.xlane.f32.xlu0 %v927
        %v958 = vpop.xlane.xlu0 %957
        %959 = vadd.xlane.f32.xlu0 %v928
        %v960 = vpop.xlane.xlu0 %959
        %v961 = vpack.c.bf16 %v670, %v669
        %v962 = vpack.c.bf16 %v672, %v671
        %v963 = vpack.c.bf16 %v674, %v673
        %v964 = vpack.c.bf16 %v676, %v675
        %v965 = vpack.c.bf16 %v678, %v677
        %v966 = vpack.c.bf16 %v680, %v679
        %v967 = vpack.c.bf16 %v682, %v681
        %v968 = vpack.c.bf16 %v684, %v683
        %v969 = vld [vmem:[%s5] sm:$0xff]
        %v970 = vld [vmem:[%s5 + $0x8] sm:$0xff]
        %v971 = vld [vmem:[%s5 + $0x10] sm:$0xff]
        %v972 = vld [vmem:[%s5 + $0x18] sm:$0xff]
        %v973 = vld [vmem:[%s5 + $0x20] sm:$0xff]
        %v974 = vld [vmem:[%s5 + $0x28] sm:$0xff]
        %v975 = vld [vmem:[%s5 + $0x30] sm:$0xff]
        %v976 = vld [vmem:[%s5 + $0x38] sm:$0xff]
        %v977 = vld [vmem:[%s5 + $0x40] sm:$0xff]
        %v978 = vld [vmem:[%s5 + $0x48] sm:$0xff]
        %v979 = vld [vmem:[%s5 + $0x50] sm:$0xff]
        %v980 = vld [vmem:[%s5 + $0x58] sm:$0xff]
        %v981 = vld [vmem:[%s5 + $0x60] sm:$0xff]
        %v982 = vld [vmem:[%s5 + $0x68] sm:$0xff]
        %v983 = vld [vmem:[%s5 + $0x70] sm:$0xff]
        %v984 = vld [vmem:[%s5 + $0x78] sm:$0xff]
        %v1001 = vunpack.c.l.b16 %v969
        %v1002 = vunpack.c.h.b16 %v969
        %v1003 = vunpack.c.l.b16 %v970
        %v1004 = vunpack.c.h.b16 %v970
        %v1005 = vunpack.c.l.b16 %v971
        %v1006 = vunpack.c.h.b16 %v971
        %v1007 = vunpack.c.l.b16 %v972
        %v1008 = vunpack.c.h.b16 %v972
        %v1009 = vunpack.c.l.b16 %v973
        %v1010 = vunpack.c.h.b16 %v973
        %v1011 = vunpack.c.l.b16 %v974
        %v1012 = vunpack.c.h.b16 %v974
        %v1013 = vunpack.c.l.b16 %v975
        %v1014 = vunpack.c.h.b16 %v975
        %v1015 = vunpack.c.l.b16 %v976
        %v1016 = vunpack.c.h.b16 %v976
        %v1017 = vunpack.c.l.b16 %v977
        %v1018 = vunpack.c.h.b16 %v977
        %v1019 = vunpack.c.l.b16 %v978
        %v1020 = vunpack.c.h.b16 %v978
        %v1021 = vunpack.c.l.b16 %v979
        %v1022 = vunpack.c.h.b16 %v979
        %v1023 = vunpack.c.l.b16 %v980
        %v1024 = vunpack.c.h.b16 %v980
        %v1025 = vunpack.c.l.b16 %v981
        %v1026 = vunpack.c.h.b16 %v981
        %v1027 = vunpack.c.l.b16 %v982
        %v1028 = vunpack.c.h.b16 %v982
        %v1029 = vunpack.c.l.b16 %v983
        %v1030 = vunpack.c.h.b16 %v983
        %v1031 = vunpack.c.l.b16 %v984
        %v1032 = vunpack.c.h.b16 %v984
        %v1033 = vpack.c.b16 %v1003, %v1001
        %v1034 = vpack.c.b16 %v1004, %v1002
        %v1035 = vpack.c.b16 %v1007, %v1005
        %v1036 = vpack.c.b16 %v1008, %v1006
        %v1037 = vpack.c.b16 %v1011, %v1009
        %v1038 = vpack.c.b16 %v1012, %v1010
        %v1039 = vpack.c.b16 %v1015, %v1013
        %v1040 = vpack.c.b16 %v1016, %v1014
        %v1041 = vpack.c.b16 %v1019, %v1017
        %v1042 = vpack.c.b16 %v1020, %v1018
        %v1043 = vpack.c.b16 %v1023, %v1021
        %v1044 = vpack.c.b16 %v1024, %v1022
        %v1045 = vpack.c.b16 %v1027, %v1025
        %v1046 = vpack.c.b16 %v1028, %v1026
        %v1047 = vpack.c.b16 %v1031, %v1029
        %v1048 = vpack.c.b16 %v1032, %v1030
        %1065 = vmatprep.subr.bf16.mxu0 %v1034
        %1066 = vmatpush1.bf16.msra.mxu0 %v1033
        %1067 = vmatprep.subr.bf16.mxu0 %v1036
        %1068 = vmatpush1.bf16.msra.mxu0 %v1035
        %1069 = vmatprep.subr.bf16.mxu0 %v1038
        %1070 = vmatpush1.bf16.msra.mxu0 %v1037
        %1071 = vmatprep.subr.bf16.mxu0 %v1040
        %1072 = vmatpush1.bf16.msra.mxu0 %v1039
        %1073 = vmatprep.subr.bf16.mxu0 %v1042
        %1074 = vmatpush1.bf16.msra.mxu0 %v1041
        %1075 = vmatprep.subr.bf16.mxu0 %v1044
        %1076 = vmatpush1.bf16.msra.mxu0 %v1043
        %1077 = vmatprep.subr.bf16.mxu0 %v1046
        %1078 = vmatpush1.bf16.msra.mxu0 %v1045
        %1079 = vmatprep.subr.bf16.mxu0 %v1048
        %1080 = vmatpush1.bf16.msra.mxu0 %v1047
        %1081 = vmatprep.subr.bf16.mxu0 0
        %1082 = vmatpush1.bf16.msra.mxu0 0
        %1083 = vmatprep.subr.bf16.mxu0 0
        %1084 = vmatpush1.bf16.msra.mxu0 0
        %1085 = vmatprep.subr.bf16.mxu0 0
        %1086 = vmatpush1.bf16.msra.mxu0 0
        %1087 = vmatprep.subr.bf16.mxu0 0
        %1088 = vmatpush1.bf16.msra.mxu0 0
        %1089 = vmatprep.subr.bf16.mxu0 0
        %1090 = vmatpush1.bf16.msra.mxu0 0
        %1091 = vmatprep.subr.bf16.mxu0 0
        %1092 = vmatpush1.bf16.msra.mxu0 0
        %1093 = vmatprep.subr.bf16.mxu0 0
        %1094 = vmatpush1.bf16.msra.mxu0 0
        %1095 = vmatprep.subr.bf16.mxu0 0
        %1096 = vmatpush1.bf16.msra.mxu0 0
        %1097 = vmatprep.mubr.bf16.mxu0 0
        %1098 = vmatmul.mubr.bf16.gmra.mrb[0].mxu0 %v961
        %v1099 = vpop.f32.mrb[0].mxu0
        %v1100 = vadd.f32 0.0, %v1099
        %v1101 = vpop.f32.mrb[0].mxu0
        %v1102 = vadd.f32 0.0, %v1101
        %v1103 = vpop.f32.mrb[0].mxu0
        %v1104 = vadd.f32 0.0, %v1103
        %v1105 = vpop.f32.mrb[0].mxu0
        %v1106 = vadd.f32 0.0, %v1105
        %1107 = vmatprep.mubr.bf16.mxu0 0
        %1108 = vmatmul.mubr.bf16.gmra.mrb[0].mxu0 %v962
        %v1109 = vpop.f32.mrb[0].mxu0
        %v1110 = vadd.f32 0.0, %v1109
        %v1111 = vpop.f32.mrb[0].mxu0
        %v1112 = vadd.f32 0.0, %v1111
        %v1113 = vpop.f32.mrb[0].mxu0
        %v1114 = vadd.f32 0.0, %v1113
        %v1115 = vpop.f32.mrb[0].mxu0
        %v1116 = vadd.f32 0.0, %v1115
        %1117 = vmatprep.mubr.bf16.mxu0 0
        %1118 = vmatmul.mubr.bf16.gmra.mrb[0].mxu0 %v963
        %v1119 = vpop.f32.mrb[0].mxu0
        %v1120 = vadd.f32 0.0, %v1119
        %v1121 = vpop.f32.mrb[0].mxu0
        %v1122 = vadd.f32 0.0, %v1121
        %v1123 = vpop.f32.mrb[0].mxu0
        %v1124 = vadd.f32 0.0, %v1123
        %v1125 = vpop.f32.mrb[0].mxu0
        %v1126 = vadd.f32 0.0, %v1125
        %1127 = vmatprep.mubr.bf16.mxu0 0
        %1128 = vmatmul.mubr.bf16.gmra.mrb[0].mxu0 %v964
        %v1129 = vpop.f32.mrb[0].mxu0
        %v1130 = vadd.f32 0.0, %v1129
        %v1131 = vpop.f32.mrb[0].mxu0
        %v1132 = vadd.f32 0.0, %v1131
        %v1133 = vpop.f32.mrb[0].mxu0
        %v1134 = vadd.f32 0.0, %v1133
        %v1135 = vpop.f32.mrb[0].mxu0
        %v1136 = vadd.f32 0.0, %v1135
        %1137 = vmatprep.mubr.bf16.mxu0 0
        %1138 = vmatmul.mubr.bf16.gmra.mrb[0].mxu0 %v965
        %v1139 = vpop.f32.mrb[0].mxu0
        %v1140 = vadd.f32 0.0, %v1139
        %v1141 = vpop.f32.mrb[0].mxu0
        %v1142 = vadd.f32 0.0, %v1141
        %v1143 = vpop.f32.mrb[0].mxu0
        %v1144 = vadd.f32 0.0, %v1143
        %v1145 = vpop.f32.mrb[0].mxu0
        %v1146 = vadd.f32 0.0, %v1145
        %1147 = vmatprep.mubr.bf16.mxu0 0
        %1148 = vmatmul.mubr.bf16.gmra.mrb[0].mxu0 %v966
        %v1149 = vpop.f32.mrb[0].mxu0
        %v1150 = vadd.f32 0.0, %v1149
        %v1151 = vpop.f32.mrb[0].mxu0
        %v1152 = vadd.f32 0.0, %v1151
        %v1153 = vpop.f32.mrb[0].mxu0
        %v1154 = vadd.f32 0.0, %v1153
        %v1155 = vpop.f32.mrb[0].mxu0
        %v1156 = vadd.f32 0.0, %v1155
        %1157 = vmatprep.mubr.bf16.mxu0 0
        %1158 = vmatmul.mubr.bf16.gmra.mrb[0].mxu0 %v967
        %v1159 = vpop.f32.mrb[0].mxu0
        %v1160 = vadd.f32 0.0, %v1159
        %v1161 = vpop.f32.mrb[0].mxu0
        %v1162 = vadd.f32 0.0, %v1161
        %v1163 = vpop.f32.mrb[0].mxu0
        %v1164 = vadd.f32 0.0, %v1163
        %v1165 = vpop.f32.mrb[0].mxu0
        %v1166 = vadd.f32 0.0, %v1165
        %1167 = vmatprep.mubr.bf16.mxu0 0
        %1168 = vmatmul.mubr.bf16.gmra.mrb[0].mxu0 %v968
        %v1169 = vpop.f32.mrb[0].mxu0
        %v1170 = vadd.f32 0.0, %v1169
        %v1171 = vpop.f32.mrb[0].mxu0
        %v1172 = vadd.f32 0.0, %v1171
        %v1173 = vpop.f32.mrb[0].mxu0
        %v1174 = vadd.f32 0.0, %v1173
        %v1175 = vpop.f32.mrb[0].mxu0
        %v1176 = vadd.f32 0.0, %v1175
        %1177 = vdwg.mxu0
        %s1178 = ssub.f32 0.0, %s359
        %v1179 = vand.u32 2147483647, %v1100
        %v1180 = vand.u32 2147483647, %v1102
        %v1181 = vand.u32 2147483647, %v1104
        %v1182 = vand.u32 2147483647, %v1106
        %v1183 = vand.u32 2147483647, %v1110
        %v1184 = vand.u32 2147483647, %v1112
        %v1185 = vand.u32 2147483647, %v1114
        %v1186 = vand.u32 2147483647, %v1116
        %v1187 = vand.u32 2147483647, %v1120
        %v1188 = vand.u32 2147483647, %v1122
        %v1189 = vand.u32 2147483647, %v1124
        %v1190 = vand.u32 2147483647, %v1126
        %v1191 = vand.u32 2147483647, %v1130
        %v1192 = vand.u32 2147483647, %v1132
        %v1193 = vand.u32 2147483647, %v1134
        %v1194 = vand.u32 2147483647, %v1136
        %v1195 = vand.u32 2147483647, %v1140
        %v1196 = vand.u32 2147483647, %v1142
        %v1197 = vand.u32 2147483647, %v1144
        %v1198 = vand.u32 2147483647, %v1146
        %v1199 = vand.u32 2147483647, %v1150
        %v1200 = vand.u32 2147483647, %v1152
        %v1201 = vand.u32 2147483647, %v1154
        %v1202 = vand.u32 2147483647, %v1156
        %v1203 = vand.u32 2147483647, %v1160
        %v1204 = vand.u32 2147483647, %v1162
        %v1205 = vand.u32 2147483647, %v1164
        %v1206 = vand.u32 2147483647, %v1166
        %v1207 = vand.u32 2147483647, %v1170
        %v1208 = vand.u32 2147483647, %v1172
        %v1209 = vand.u32 2147483647, %v1174
        %v1210 = vand.u32 2147483647, %v1176
        %v1211 = vadd.f32 %v1179, %v1180
        %1212 = vadd.xlane.f32.xlu0 %v1211
        %v1213 = vpop.xlane.xlu0 %1212
        %v1214 = vadd.f32 %v1181, %v1182
        %1215 = vadd.xlane.f32.xlu0 %v1214
        %v1216 = vpop.xlane.xlu0 %1215
        %v1217 = vadd.f32 %v1183, %v1184
        %1218 = vadd.xlane.f32.xlu0 %v1217
        %v1219 = vpop.xlane.xlu0 %1218
        %v1220 = vadd.f32 %v1185, %v1186
        %1221 = vadd.xlane.f32.xlu0 %v1220
        %v1222 = vpop.xlane.xlu0 %1221
        %v1223 = vadd.f32 %v1187, %v1188
        %1224 = vadd.xlane.f32.xlu0 %v1223
        %v1225 = vpop.xlane.xlu0 %1224
        %v1226 = vadd.f32 %v1189, %v1190
        %1227 = vadd.xlane.f32.xlu0 %v1226
        %v1228 = vpop.xlane.xlu0 %1227
        %v1229 = vadd.f32 %v1191, %v1192
        %1230 = vadd.xlane.f32.xlu0 %v1229
        %v1231 = vpop.xlane.xlu0 %1230
        %v1232 = vadd.f32 %v1193, %v1194
        %1233 = vadd.xlane.f32.xlu0 %v1232
        %v1234 = vpop.xlane.xlu0 %1233
        %v1235 = vadd.f32 %v1195, %v1196
        %1236 = vadd.xlane.f32.xlu0 %v1235
        %v1237 = vpop.xlane.xlu0 %1236
        %v1238 = vadd.f32 %v1197, %v1198
        %1239 = vadd.xlane.f32.xlu0 %v1238
        %v1240 = vpop.xlane.xlu0 %1239
        %v1241 = vadd.f32 %v1199, %v1200
        %1242 = vadd.xlane.f32.xlu0 %v1241
        %v1243 = vpop.xlane.xlu0 %1242
        %v1244 = vadd.f32 %v1201, %v1202
        %1245 = vadd.xlane.f32.xlu0 %v1244
        %v1246 = vpop.xlane.xlu0 %1245
        %v1247 = vadd.f32 %v1203, %v1204
        %1248 = vadd.xlane.f32.xlu0 %v1247
        %v1249 = vpop.xlane.xlu0 %1248
        %v1250 = vadd.f32 %v1205, %v1206
        %1251 = vadd.xlane.f32.xlu0 %v1250
        %v1252 = vpop.xlane.xlu0 %1251
        %v1253 = vadd.f32 %v1207, %v1208
        %1254 = vadd.xlane.f32.xlu0 %v1253
        %v1255 = vpop.xlane.xlu0 %1254
        %v1256 = vadd.f32 %v1209, %v1210
        %1257 = vadd.xlane.f32.xlu0 %v1256
        %v1258 = vpop.xlane.xlu0 %1257
        %v1259 = vstv %s1178
        %v1260 = vmul.f32 %v1259, %v1213
        %v1261 = vmul.f32 %v1259, %v1216
        %v1262 = vmul.f32 %v1259, %v1219
        %v1263 = vmul.f32 %v1259, %v1222
        %v1264 = vmul.f32 %v1259, %v1225
        %v1265 = vmul.f32 %v1259, %v1228
        %v1266 = vmul.f32 %v1259, %v1231
        %v1267 = vmul.f32 %v1259, %v1234
        %v1268 = vmul.f32 %v1259, %v1237
        %v1269 = vmul.f32 %v1259, %v1240
        %v1270 = vmul.f32 %v1259, %v1243
        %v1271 = vmul.f32 %v1259, %v1246
        %v1272 = vmul.f32 %v1259, %v1249
        %v1273 = vmul.f32 %v1259, %v1252
        %v1274 = vmul.f32 %v1259, %v1255
        %v1275 = vmul.f32 %v1259, %v1258
        %v1276 = vld [vmem:[%s7] sm:$0x1]
        %v1278 = vlaneseq
        %v1279 = vshrl.u32 %v1278, 7
        %v1280 = vsub.s32 0, %v1279
        %v1281 = vrot.slane %v1276, %v1280
        %v1283 = vmul.f32 %v360, %v1281
        %v1284 = vmul.f32 %v361, %v1281
        %v1285 = vmul.f32 %v362, %v1281
        %v1286 = vmul.f32 %v363, %v1281
        %v1287 = vmul.f32 %v364, %v1281
        %v1288 = vmul.f32 %v365, %v1281
        %v1289 = vmul.f32 %v366, %v1281
        %v1290 = vmul.f32 %v367, %v1281
        %v1291 = vmul.f32 %v368, %v1281
        %v1292 = vmul.f32 %v369, %v1281
        %v1293 = vmul.f32 %v370, %v1281
        %v1294 = vmul.f32 %v371, %v1281
        %v1295 = vmul.f32 %v372, %v1281
        %v1296 = vmul.f32 %v373, %v1281
        %v1297 = vmul.f32 %v374, %v1281
        %v1298 = vmul.f32 %v375, %v1281
        %v1299 = vsel %vm378, %v1283, 0.0
        %1300 = vadd.xlane.f32.xlu0 %v1299
        %v1301 = vpop.xlane.xlu0 %1300
        %v1302 = vsel %vm378, %v1284, 0.0
        %1303 = vadd.xlane.f32.xlu0 %v1302
        %v1304 = vpop.xlane.xlu0 %1303
        %v1305 = vsel %vm378, %v1285, 0.0
        %1306 = vadd.xlane.f32.xlu0 %v1305
        %v1307 = vpop.xlane.xlu0 %1306
        %v1308 = vsel %vm378, %v1286, 0.0
        %1309 = vadd.xlane.f32.xlu0 %v1308
        %v1310 = vpop.xlane.xlu0 %1309
        %v1311 = vsel %vm378, %v1287, 0.0
        %1312 = vadd.xlane.f32.xlu0 %v1311
        %v1313 = vpop.xlane.xlu0 %1312
        %v1314 = vsel %vm378, %v1288, 0.0
        %1315 = vadd.xlane.f32.xlu0 %v1314
        %v1316 = vpop.xlane.xlu0 %1315
        %v1317 = vsel %vm378, %v1289, 0.0
        %1318 = vadd.xlane.f32.xlu0 %v1317
        %v1319 = vpop.xlane.xlu0 %1318
        %v1320 = vsel %vm378, %v1290, 0.0
        %1321 = vadd.xlane.f32.xlu0 %v1320
        %v1322 = vpop.xlane.xlu0 %1321
        %v1323 = vsel %vm378, %v1291, 0.0
        %1324 = vadd.xlane.f32.xlu0 %v1323
        %v1325 = vpop.xlane.xlu0 %1324
        %v1326 = vsel %vm378, %v1292, 0.0
        %1327 = vadd.xlane.f32.xlu0 %v1326
        %v1328 = vpop.xlane.xlu0 %1327
        %v1329 = vsel %vm378, %v1293, 0.0
        %1330 = vadd.xlane.f32.xlu0 %v1329
        %v1331 = vpop.xlane.xlu0 %1330
        %v1332 = vsel %vm378, %v1294, 0.0
        %1333 = vadd.xlane.f32.xlu0 %v1332
        %v1334 = vpop.xlane.xlu0 %1333
        %v1335 = vsel %vm378, %v1295, 0.0
        %1336 = vadd.xlane.f32.xlu0 %v1335
        %v1337 = vpop.xlane.xlu0 %1336
        %v1338 = vsel %vm378, %v1296, 0.0
        %1339 = vadd.xlane.f32.xlu0 %v1338
        %v1340 = vpop.xlane.xlu0 %1339
        %v1341 = vsel %vm378, %v1297, 0.0
        %1342 = vadd.xlane.f32.xlu0 %v1341
        %v1343 = vpop.xlane.xlu0 %1342
        %v1344 = vsel %vm378, %v1298, 0.0
        %1345 = vadd.xlane.f32.xlu0 %v1344
        %v1346 = vpop.xlane.xlu0 %1345
        %v1347 = vadd.f32 %v930, %v1260
        %v1348 = vadd.f32 %v932, %v1261
        %v1349 = vadd.f32 %v934, %v1262
        %v1350 = vadd.f32 %v936, %v1263
        %v1351 = vadd.f32 %v938, %v1264
        %v1352 = vadd.f32 %v940, %v1265
        %v1353 = vadd.f32 %v942, %v1266
        %v1354 = vadd.f32 %v944, %v1267
        %v1355 = vadd.f32 %v946, %v1268
        %v1356 = vadd.f32 %v948, %v1269
        %v1357 = vadd.f32 %v950, %v1270
        %v1358 = vadd.f32 %v952, %v1271
        %v1359 = vadd.f32 %v954, %v1272
        %v1360 = vadd.f32 %v956, %v1273
        %v1361 = vadd.f32 %v958, %v1274
        %v1362 = vadd.f32 %v960, %v1275
        %v1363 = vadd.f32 %v1347, %v1301
        %v1364 = vadd.f32 %v1348, %v1304
        %v1365 = vadd.f32 %v1349, %v1307
        %v1366 = vadd.f32 %v1350, %v1310
        %v1367 = vadd.f32 %v1351, %v1313
        %v1368 = vadd.f32 %v1352, %v1316
        %v1369 = vadd.f32 %v1353, %v1319
        %v1370 = vadd.f32 %v1354, %v1322
        %v1371 = vadd.f32 %v1355, %v1325
        %v1372 = vadd.f32 %v1356, %v1328
        %v1373 = vadd.f32 %v1357, %v1331
        %v1374 = vadd.f32 %v1358, %v1334
        %v1375 = vadd.f32 %v1359, %v1337
        %v1376 = vadd.f32 %v1360, %v1340
        %v1377 = vadd.f32 %v1361, %v1343
        %v1378 = vadd.f32 %v1362, %v1346
        %v1395 = vlaneseq
        %v1396 = vand.u32 %v1395, 127
        %v1397 = vlaneseq
        %v1398 = vshrl.u32 %v1397, 7
        %v1399 = vsub.s32 %v1396, %v1398
        %v1400 = vrot.slane %v1363, %v1399
        %v1401 = vadd.s32 %v1396, 4294967288
        %v1402 = vlaneseq
        %v1403 = vshrl.u32 %v1402, 7
        %v1404 = vsub.s32 %v1401, %v1403
        %v1405 = vrot.slane %v1364, %v1404
        %vm1406 = vcmask 130112
        %v1407 = vsel %vm1406, %v1405, %v1400
        %v1408 = vlaneseq
        %v1409 = vshrl.u32 %v1408, 7
        %v1410 = vsub.s32 %v1396, %v1409
        %v1411 = vrot.slane %v1365, %v1410
        %v1412 = vlaneseq
        %v1413 = vshrl.u32 %v1412, 7
        %v1414 = vsub.s32 %v1401, %v1413
        %v1415 = vrot.slane %v1366, %v1414
        %v1416 = vsel %vm1406, %v1415, %v1411
        %v1417 = vlaneseq
        %v1418 = vshrl.u32 %v1417, 7
        %v1419 = vsub.s32 %v1396, %v1418
        %v1420 = vrot.slane %v1367, %v1419
        %v1421 = vlaneseq
        %v1422 = vshrl.u32 %v1421, 7
        %v1423 = vsub.s32 %v1401, %v1422
        %v1424 = vrot.slane %v1368, %v1423
        %v1425 = vsel %vm1406, %v1424, %v1420
        %v1426 = vlaneseq
        %v1427 = vshrl.u32 %v1426, 7
        %v1428 = vsub.s32 %v1396, %v1427
        %v1429 = vrot.slane %v1369, %v1428
        %v1430 = vlaneseq
        %v1431 = vshrl.u32 %v1430, 7
        %v1432 = vsub.s32 %v1401, %v1431
        %v1433 = vrot.slane %v1370, %v1432
        %v1434 = vsel %vm1406, %v1433, %v1429
        %v1435 = vlaneseq
        %v1436 = vshrl.u32 %v1435, 7
        %v1437 = vsub.s32 %v1396, %v1436
        %v1438 = vrot.slane %v1371, %v1437
        %v1439 = vlaneseq
        %v1440 = vshrl.u32 %v1439, 7
        %v1441 = vsub.s32 %v1401, %v1440
        %v1442 = vrot.slane %v1372, %v1441
        %v1443 = vsel %vm1406, %v1442, %v1438
        %v1444 = vlaneseq
        %v1445 = vshrl.u32 %v1444, 7
        %v1446 = vsub.s32 %v1396, %v1445
        %v1447 = vrot.slane %v1373, %v1446
        %v1448 = vlaneseq
        %v1449 = vshrl.u32 %v1448, 7
        %v1450 = vsub.s32 %v1401, %v1449
        %v1451 = vrot.slane %v1374, %v1450
        %v1452 = vsel %vm1406, %v1451, %v1447
        %v1453 = vlaneseq
        %v1454 = vshrl.u32 %v1453, 7
        %v1455 = vsub.s32 %v1396, %v1454
        %v1456 = vrot.slane %v1375, %v1455
        %v1457 = vlaneseq
        %v1458 = vshrl.u32 %v1457, 7
        %v1459 = vsub.s32 %v1401, %v1458
        %v1460 = vrot.slane %v1376, %v1459
        %v1461 = vsel %vm1406, %v1460, %v1456
        %v1462 = vlaneseq
        %v1463 = vshrl.u32 %v1462, 7
        %v1464 = vsub.s32 %v1396, %v1463
        %v1465 = vrot.slane %v1377, %v1464
        %v1466 = vlaneseq
        %v1467 = vshrl.u32 %v1466, 7
        %v1468 = vsub.s32 %v1401, %v1467
        %v1469 = vrot.slane %v1378, %v1468
        %v1470 = vsel %vm1406, %v1469, %v1465
        %vm1471 = vcmask 1041409
        %v1472 = vsel %vm1471, %v1416, %v1407
        %vm1473 = vcmask 1042434
        %v1474 = vsel %vm1473, %v1425, %v1472
        %vm1475 = vcmask 1043459
        %v1476 = vsel %vm1475, %v1434, %v1474
        %vm1477 = vcmask 1044484
        %v1478 = vsel %vm1477, %v1443, %v1476
        %vm1479 = vcmask 1045509
        %v1480 = vsel %vm1479, %v1452, %v1478
        %vm1481 = vcmask 1046534
        %v1482 = vsel %vm1481, %v1461, %v1480
        %vm1483 = vcmask 1047559
        %v1484 = vsel %vm1483, %v1470, %v1482
        %vm1486 = vcmask 130048
        %1487 = vst.msk [vmem:[%s339] sm:$0xff] %vm1486, %v1484
        %s1488 = sand.u32 %s219, 1
        %s1489 = scalar_lea.sflag [#allocation4], %s1488
        %s1490 = sand.u32 %s219, 1
        %s1491 = smul.addr %s1490, 8
        %s1492 = scalar_lea.vmem [#allocation3], %s1491
        // Predicated region
        $region53: #{tpu_custom_call.1} parent=51 // pred_check
          %p1493 = pneg %p229
        $region54: #{tpu_custom_call.1} parent=51 // pred_check_branch
          %1495 = sbr.rel (%p1493) target = $region56
        $region55: #{tpu_custom_call.1} parent=51 // pred_region
          %s1497 = ssub.s32 128, 128
          %1498 = vsyncadd %s1489, %s1497
          %s1499 = smul.addr %s23, 128
          %s1500 = scalar_lea.hbm %s8, %s1499
          %s1502 = sshll.u32 %s1492, 4
          %s1503 = int_to_ptr.vmem [resolvable:$true] %s1502
          %1505 = dma.vmem_to_hbm [thread:$0]  %s1503, 128, %s1500, %s1489
        $region56: #{tpu_custom_call.1} parent=51 // pred_fallthru
          _
      $region52: #{tpu_custom_call.1} parent=5 // pred_fallthru
        _
      %p1506 = scmp.le.s32.totalorder 2, %s18
      // Predicated region
      $region57: #{tpu_custom_call.1} parent=5 // pred_check
        %p1507 = pneg %p1506
      $region58: #{tpu_custom_call.1} parent=5 // pred_check_branch
        %1509 = sbr.rel (%p1507) target = $region60
      $region59: #{tpu_custom_call.1} parent=5 // pred_region
        %s1510 = ssub.s32 %s18, 2
        // Predicated region
        $region61: #{tpu_custom_call.1} parent=59 // pred_check
          %p1511 = pneg %p235
        $region62: #{tpu_custom_call.1} parent=59 // pred_check_branch
          %1513 = sbr.rel (%p1511) target = $region64
        $region63: #{tpu_custom_call.1} parent=59 // pred_region
          %s1514 = sand.u32 %s220, 1
          %s1515 = scalar_lea.sflag [#allocation4], %s1514
          %s1516 = sand.u32 %s220, 1
          %s1517 = smul.addr %s1516, 8
          %s1518 = scalar_lea.vmem [#allocation3], %s1517
          %1519 = dma.done %s1515, 128
        $region64: #{tpu_custom_call.1} parent=59 // pred_fallthru
          _
      $region60: #{tpu_custom_call.1} parent=5 // pred_fallthru
        _
    $region6: #{tpu_custom_call.1} parent=1 // loop_footer
      %s22 = sadd.s32 1, %s18
    $region7: #{tpu_custom_call.1} parent=1 // loop_footer_branch
      %17 = sbr.rel target = $region3
    $region8: #{tpu_custom_call.1} parent=1 // loop_exit
      _
    %1520 = vsyncpa [#allocation4], 1
    %s1521 = scalar_lea.sflag [#allocation4], 1
    %1522 = vsyncpa %s1521, 1

</llo_original>
